<compile_context>
chip_gen: v7x
topology: tpu7x:2x2x1
jax: 0.10.0
libtpu: 0.0.40
codegen_flags: <defaults>
</compile_context>

<pallas_src>
import functools

import jax
import jax.numpy as jnp
from jax import lax
from jax.experimental import pallas as pl
from jax.experimental.pallas import tpu as pltpu


# ----------------------------- fused kernel --------------------------------- #

def mha_fused_kernel(x_ref, wqkv_ref, bqkv_ref, wo_ref, bo_ref, gamma_ref,
                     beta_ref, o_ref, *, num_head, dim_head, seq_len, eps,
                     compute_dtype):
    """Fused MHA block for a [R, D] slab covering whole batch elements.

    Block shapes:
      x_ref, o_ref : [R, D]      R = block_batch * L
      wqkv_ref     : [D, 3D]     concat of (Wq^T * scale) | Wk^T | Wv^T
      bqkv_ref     : [1, 3D]
      wo_ref       : [D, D]      Wo^T
      bo/gamma/beta: [1, D]
    """
    f32 = jnp.float32
    H, Dh, L = num_head, dim_head, seq_len
    D = H * Dh
    R = x_ref.shape[0]           # block_batch * L
    rpg = L // H                 # source rows per softmax group
    G = (R // L) * H             # softmax groups in this block

    x = x_ref[...]                                                   # [R, D]

    def mm(a, b):
        if compute_dtype != f32:
            a = a.astype(compute_dtype)
            b = b.astype(compute_dtype)
        return jnp.dot(a, b, preferred_element_type=f32)

    # ---- fused Q/K/V projection: one MXU matmul, 3D-wide lane-dense output.
    #      The 1/sqrt(Dh) scale is already folded into the Q weight/bias. ----
    qkv = mm(x, wqkv_ref[...]) + bqkv_ref[...]                       # [R, 3D]

    # ---- head split (raw .view semantics, chunk-major within each group) ----
    # Group g owns source rows [g*rpg, (g+1)*rpg) of the slab; its [L, Dh]
    # view rows are the H lane-chunks of those rows.  Built with static
    # slices + concatenates only (no reshapes, no selection matmuls).
    q_l, k_l, v_l = [], [], []
    for g in range(G):
        rows = qkv[g * rpg:(g + 1) * rpg, :]                         # [rpg, 3D]

        def chunks(off, rows=rows):
            return jnp.concatenate(
                [rows[:, off + c * Dh: off + (c + 1) * Dh] for c in range(H)],
                axis=0)                                              # [L, Dh]

        q_l.append(chunks(0))
        k_l.append(chunks(D))
        v_l.append(chunks(2 * D))
    q3 = jnp.stack(q_l, axis=0)                                      # [G, L, Dh]
    k3 = jnp.stack(k_l, axis=0)
    v3 = jnp.stack(v_l, axis=0)
    if compute_dtype != f32:
        q3 = q3.astype(compute_dtype)
        k3 = k3.astype(compute_dtype)
        v3 = v3.astype(compute_dtype)

    # ---- per-group scaled dot-product attention (batched over groups) ----
    s = jnp.einsum('gqd,gkd->gqk', q3, k3,
                   preferred_element_type=f32)                       # [G, L, L]
    s = s - jnp.max(s, axis=-1, keepdims=True)
    p = jnp.exp(s)
    # approx=False keeps exact 1e-4 parity with the PyTorch math; flip to
    # approx=True (EUP slot, ~free) if the tolerance budget allows.
    p = p * pl.reciprocal(jnp.sum(p, axis=-1, keepdims=True), approx=False)
    if compute_dtype != f32:
        p = p.astype(compute_dtype)
    ctx3 = jnp.einsum('gqk,gkd->gqd', p, v3,
                      preferred_element_type=f32)                    # [G, L, Dh]

    # ---- head merge: exact inverse of the split (slices + concatenates) ----
    rows_out = []
    for g in range(G):
        cg = ctx3[g]                                                 # [L, Dh]
        rows_out.append(jnp.concatenate(
            [cg[c * rpg:(c + 1) * rpg, :] for c in range(H)], axis=1))  # [rpg, D]
    ctx = jnp.concatenate(rows_out, axis=0)                          # [R, D]

    # ---- output projection + dropout(p=0) + residual + LayerNorm ----
    out = mm(ctx, wo_ref[...]) + bo_ref[...]
    out = out + x
    mean = jnp.mean(out, axis=-1, keepdims=True)
    var = jnp.mean(jnp.square(out - mean), axis=-1, keepdims=True)
    out = (out - mean) * lax.rsqrt(var + eps)
    # TODO(synk): output last dim is D (<128 lanes here) -> masked stores; a
    # lane-dense [B, L*D] presentation would need an in-kernel minor reshape.
    o_ref[...] = (out * gamma_ref[...] + beta_ref[...]).astype(o_ref.dtype)


# ----------------------------- wrapper --------------------------------------- #

def multi_head_attention(x, params, num_head, *, block_batch=None,
                         compute_dtype=jnp.float32):
    """Forward pass of Multi_Head_Attention. x: [B, L, D] float32."""
    B, L, D = x.shape
    H = num_head
    assert D % H == 0
    Dh = D // H
    # TODO(synk): kernel assumes L % H == 0 (holds for pad_size=100 with the
    # usual head counts); the raw-.view grouping for L % H != 0 splits source
    # rows mid-feature and is not implemented.
    assert L % H == 0

    scale = float(Dh) ** -0.5
    # Fold the attention scale into Wq/bq (free, trace time) and concatenate
    # Q/K/V weights -> a single [D, 3D] matmul inside the kernel.
    wqkv = jnp.concatenate(
        [params["wq"].T * scale, params["wk"].T, params["wv"].T], axis=1)  # [D, 3D]
    bqkv = jnp.concatenate(
        [params["bq"] * scale, params["bk"], params["bv"]])[None, :]       # [1, 3D]
    wo = params["wo"].T                                                    # [D, D]
    if compute_dtype != jnp.float32:
        wqkv = wqkv.astype(compute_dtype)
        wo = wo.astype(compute_dtype)

    # Several whole batch elements per grid step (amortize per-step overhead,
    # widen the MXU M dim).  Toy B=2 -> single grid step.
    if block_batch is None:
        block_batch = max(1, min(B, max(1, 256 // L)))
    n_steps = pl.cdiv(B, block_batch)
    R = block_batch * L

    x2 = x.reshape(B * L, D)          # wrapper-side reshape is free (XLA)

    kernel = functools.partial(
        mha_fused_kernel, num_head=H, dim_head=Dh, seq_len=L, eps=1e-5,
        compute_dtype=compute_dtype)

    out2 = pl.pallas_call(
        kernel,
        grid=(n_steps,),
        in_specs=[
            pl.BlockSpec((R, D), lambda i: (i, 0)),        # x slab (per step)
            pl.BlockSpec((D, 3 * D), lambda i: (0, 0)),    # Wqkv
            pl.BlockSpec((1, 3 * D), lambda i: (0, 0)),    # bqkv
            pl.BlockSpec((D, D), lambda i: (0, 0)),        # Wo^T
            pl.BlockSpec((1, D), lambda i: (0, 0)),        # bo
            pl.BlockSpec((1, D), lambda i: (0, 0)),        # gamma
            pl.BlockSpec((1, D), lambda i: (0, 0)),        # beta
        ],
        out_specs=pl.BlockSpec((R, D), lambda i: (i, 0)),
        out_shape=jax.ShapeDtypeStruct((B * L, D), jnp.float32),
        compiler_params=pltpu.CompilerParams(
            dimension_semantics=("parallel",),             # steps independent
            vmem_limit_bytes=32 * 1024 * 1024),
    )(x2, wqkv, bqkv, wo, params["bo"][None, :],
      params["gamma"][None, :], params["beta"][None, :])
    return out2.reshape(B, L, D)


# ----------------------------- reference (pure JAX) -------------------------- #

def reference_forward(x, params, num_head):
    B, L, D = x.shape
    dim_head = D // num_head
    q = x @ params["wq"].T + params["bq"]
    k = x @ params["wk"].T + params["bk"]
    v = x @ params["wv"].T + params["bv"]
    q = q.reshape(B * num_head, L, dim_head)
    k = k.reshape(B * num_head, L, dim_head)
    v = v.reshape(B * num_head, L, dim_head)
    scale = dim_head ** (-0.5)
    attn = jnp.einsum("bqd,bkd->bqk", q, k) * scale
    attn = jax.nn.softmax(attn, axis=-1)
    ctx = jnp.einsum("bqk,bkd->bqd", attn, v).reshape(B, L, D)
    out = ctx @ params["wo"].T + params["bo"]
    out = out + x
    mean = jnp.mean(out, axis=-1, keepdims=True)
    var = jnp.mean((out - mean) ** 2, axis=-1, keepdims=True)
    out = (out - mean) / jnp.sqrt(var + 1e-5)
    return out * params["gamma"] + params["beta"]


# ----------------------------- main ----------------------------------------- #

if __name__ == "__main__":
    B, L, D = 2, 8, 32          # batch, pad_size (seq), dim_model
    num_head = 4

    key = jax.random.PRNGKey(0)
    keys = jax.random.split(key, 9)
    bound = 1.0 / (D ** 0.5)    # PyTorch default nn.Linear init range

    params = {
        "wq": jax.random.uniform(keys[0], (D, D), jnp.float32, -bound, bound),
        "bq": jax.random.uniform(keys[1], (D,), jnp.float32, -bound, bound),
        "wk": jax.random.uniform(keys[2], (D, D), jnp.float32, -bound, bound),
        "bk": jax.random.uniform(keys[3], (D,), jnp.float32, -bound, bound),
        "wv": jax.random.uniform(keys[4], (D, D), jnp.float32, -bound, bound),
        "bv": jax.random.uniform(keys[5], (D,), jnp.float32, -bound, bound),
        "wo": jax.random.uniform(keys[6], (D, D), jnp.float32, -bound, bound),
        "bo": jax.random.uniform(keys[7], (D,), jnp.float32, -bound, bound),
        "gamma": jnp.ones((D,), jnp.float32),   # nn.LayerNorm default init
        "beta": jnp.zeros((D,), jnp.float32),
    }

    x = jax.random.normal(keys[8], (B, L, D), jnp.float32)

    out = jax.block_until_ready(multi_head_attention(x, params, num_head))
    ref = jax.block_until_ready(reference_forward(x, params, num_head))

    assert out.shape == (B, L, D)
    assert jnp.allclose(out, ref, atol=1e-4, rtol=1e-4), "mismatch vs reference"
    print("KERNEL_OK")
</pallas_src>

<mosaic_0001>
module attributes {stable_mosaic.version = 11 : i64} {
  func.func @mha_fused_kernel(%arg0: i32, %arg1: memref<16x32xf32, #tpu.memory_space<vmem>>, %arg2: memref<32x96xf32, #tpu.memory_space<vmem>>, %arg3: memref<1x96xf32, #tpu.memory_space<vmem>>, %arg4: memref<32x32xf32, #tpu.memory_space<vmem>>, %arg5: memref<1x32xf32, #tpu.memory_space<vmem>>, %arg6: memref<1x32xf32, #tpu.memory_space<vmem>>, %arg7: memref<1x32xf32, #tpu.memory_space<vmem>>, %arg8: memref<16x32xf32, #tpu.memory_space<vmem>>) attributes {dimension_semantics = [#tpu.dimension_semantics<parallel>], iteration_bounds = array<i64: 1>, scalar_prefetch = 0 : i64, scratch_operands = 0 : i64, tpu.core_type = #tpu.core_type<tc>, window_params = [{transform_indices = @transform_0, window_bounds = array<i64: 16, 32>}, {pipeline_mode = #tpu.pipeline_mode<synchronous>, transform_indices = @transform_1, window_bounds = array<i64: 32, 96>}, {pipeline_mode = #tpu.pipeline_mode<synchronous>, transform_indices = @transform_2, window_bounds = array<i64: 1, 96>}, {pipeline_mode = #tpu.pipeline_mode<synchronous>, transform_indices = @transform_3, window_bounds = array<i64: 32, 32>}, {pipeline_mode = #tpu.pipeline_mode<synchronous>, transform_indices = @transform_4, window_bounds = array<i64: 1, 32>}, {pipeline_mode = #tpu.pipeline_mode<synchronous>, transform_indices = @transform_5, window_bounds = array<i64: 1, 32>}, {pipeline_mode = #tpu.pipeline_mode<synchronous>, transform_indices = @transform_6, window_bounds = array<i64: 1, 32>}, {transform_indices = @transform_7, window_bounds = array<i64: 16, 32>}]} {
    %c0 = arith.constant 0 : index
    %c0_0 = arith.constant 0 : index
    %0 = vector.load %arg1[%c0, %c0_0] : memref<16x32xf32, #tpu.memory_space<vmem>>, vector<16x32xf32>
    %c0_1 = arith.constant 0 : index
    %c0_2 = arith.constant 0 : index
    %1 = vector.load %arg2[%c0_1, %c0_2] : memref<32x96xf32, #tpu.memory_space<vmem>>, vector<32x96xf32>
    %cst = arith.constant dense<0.000000e+00> : vector<16x96xf32>
    %2 = tpu.matmul %0, %1, %cst {dimension_numbers = #tpu.dot_dimension_numbers<[1], [0], [0], [1], [0, 0, 1, 1], [], []>} : vector<16x32xf32>, vector<32x96xf32>, vector<16x96xf32> -> vector<16x96xf32>
    %c0_3 = arith.constant 0 : index
    %c0_4 = arith.constant 0 : index
    %3 = vector.load %arg3[%c0_3, %c0_4] : memref<1x96xf32, #tpu.memory_space<vmem>>, vector<1x96xf32>
    %4 = vector.broadcast %3 : vector<1x96xf32> to vector<16x96xf32>
    %5 = arith.addf %2, %4 : vector<16x96xf32>
    %6 = vector.extract_strided_slice %5 {offsets = [0, 0], sizes = [2, 96], strides = [1, 1]} : vector<16x96xf32> to vector<2x96xf32>
    %7 = vector.extract_strided_slice %6 {offsets = [0, 0], sizes = [2, 8], strides = [1, 1]} : vector<2x96xf32> to vector<2x8xf32>
    %8 = vector.extract_strided_slice %6 {offsets = [0, 8], sizes = [2, 8], strides = [1, 1]} : vector<2x96xf32> to vector<2x8xf32>
    %9 = vector.extract_strided_slice %6 {offsets = [0, 16], sizes = [2, 8], strides = [1, 1]} : vector<2x96xf32> to vector<2x8xf32>
    %10 = vector.extract_strided_slice %6 {offsets = [0, 24], sizes = [2, 8], strides = [1, 1]} : vector<2x96xf32> to vector<2x8xf32>
    %11 = tpu.concatenate %7, %8, %9, %10 in 0 : vector<2x8xf32>, vector<2x8xf32>, vector<2x8xf32>, vector<2x8xf32> -> vector<8x8xf32>
    %12 = vector.extract_strided_slice %6 {offsets = [0, 32], sizes = [2, 8], strides = [1, 1]} : vector<2x96xf32> to vector<2x8xf32>
    %13 = vector.extract_strided_slice %6 {offsets = [0, 40], sizes = [2, 8], strides = [1, 1]} : vector<2x96xf32> to vector<2x8xf32>
    %14 = vector.extract_strided_slice %6 {offsets = [0, 48], sizes = [2, 8], strides = [1, 1]} : vector<2x96xf32> to vector<2x8xf32>
    %15 = vector.extract_strided_slice %6 {offsets = [0, 56], sizes = [2, 8], strides = [1, 1]} : vector<2x96xf32> to vector<2x8xf32>
    %16 = tpu.concatenate %12, %13, %14, %15 in 0 : vector<2x8xf32>, vector<2x8xf32>, vector<2x8xf32>, vector<2x8xf32> -> vector<8x8xf32>
    %17 = vector.extract_strided_slice %6 {offsets = [0, 64], sizes = [2, 8], strides = [1, 1]} : vector<2x96xf32> to vector<2x8xf32>
    %18 = vector.extract_strided_slice %6 {offsets = [0, 72], sizes = [2, 8], strides = [1, 1]} : vector<2x96xf32> to vector<2x8xf32>
    %19 = vector.extract_strided_slice %6 {offsets = [0, 80], sizes = [2, 8], strides = [1, 1]} : vector<2x96xf32> to vector<2x8xf32>
    %20 = vector.extract_strided_slice %6 {offsets = [0, 88], sizes = [2, 8], strides = [1, 1]} : vector<2x96xf32> to vector<2x8xf32>
    %21 = tpu.concatenate %17, %18, %19, %20 in 0 : vector<2x8xf32>, vector<2x8xf32>, vector<2x8xf32>, vector<2x8xf32> -> vector<8x8xf32>
    %22 = vector.extract_strided_slice %5 {offsets = [2, 0], sizes = [2, 96], strides = [1, 1]} : vector<16x96xf32> to vector<2x96xf32>
    %23 = vector.extract_strided_slice %22 {offsets = [0, 0], sizes = [2, 8], strides = [1, 1]} : vector<2x96xf32> to vector<2x8xf32>
    %24 = vector.extract_strided_slice %22 {offsets = [0, 8], sizes = [2, 8], strides = [1, 1]} : vector<2x96xf32> to vector<2x8xf32>
    %25 = vector.extract_strided_slice %22 {offsets = [0, 16], sizes = [2, 8], strides = [1, 1]} : vector<2x96xf32> to vector<2x8xf32>
    %26 = vector.extract_strided_slice %22 {offsets = [0, 24], sizes = [2, 8], strides = [1, 1]} : vector<2x96xf32> to vector<2x8xf32>
    %27 = tpu.concatenate %23, %24, %25, %26 in 0 : vector<2x8xf32>, vector<2x8xf32>, vector<2x8xf32>, vector<2x8xf32> -> vector<8x8xf32>
    %28 = vector.extract_strided_slice %22 {offsets = [0, 32], sizes = [2, 8], strides = [1, 1]} : vector<2x96xf32> to vector<2x8xf32>
    %29 = vector.extract_strided_slice %22 {offsets = [0, 40], sizes = [2, 8], strides = [1, 1]} : vector<2x96xf32> to vector<2x8xf32>
    %30 = vector.extract_strided_slice %22 {offsets = [0, 48], sizes = [2, 8], strides = [1, 1]} : vector<2x96xf32> to vector<2x8xf32>
    %31 = vector.extract_strided_slice %22 {offsets = [0, 56], sizes = [2, 8], strides = [1, 1]} : vector<2x96xf32> to vector<2x8xf32>
    %32 = tpu.concatenate %28, %29, %30, %31 in 0 : vector<2x8xf32>, vector<2x8xf32>, vector<2x8xf32>, vector<2x8xf32> -> vector<8x8xf32>
    %33 = vector.extract_strided_slice %22 {offsets = [0, 64], sizes = [2, 8], strides = [1, 1]} : vector<2x96xf32> to vector<2x8xf32>
    %34 = vector.extract_strided_slice %22 {offsets = [0, 72], sizes = [2, 8], strides = [1, 1]} : vector<2x96xf32> to vector<2x8xf32>
    %35 = vector.extract_strided_slice %22 {offsets = [0, 80], sizes = [2, 8], strides = [1, 1]} : vector<2x96xf32> to vector<2x8xf32>
    %36 = vector.extract_strided_slice %22 {offsets = [0, 88], sizes = [2, 8], strides = [1, 1]} : vector<2x96xf32> to vector<2x8xf32>
    %37 = tpu.concatenate %33, %34, %35, %36 in 0 : vector<2x8xf32>, vector<2x8xf32>, vector<2x8xf32>, vector<2x8xf32> -> vector<8x8xf32>
    %38 = vector.extract_strided_slice %5 {offsets = [4, 0], sizes = [2, 96], strides = [1, 1]} : vector<16x96xf32> to vector<2x96xf32>
    %39 = vector.extract_strided_slice %38 {offsets = [0, 0], sizes = [2, 8], strides = [1, 1]} : vector<2x96xf32> to vector<2x8xf32>
    %40 = vector.extract_strided_slice %38 {offsets = [0, 8], sizes = [2, 8], strides = [1, 1]} : vector<2x96xf32> to vector<2x8xf32>
    %41 = vector.extract_strided_slice %38 {offsets = [0, 16], sizes = [2, 8], strides = [1, 1]} : vector<2x96xf32> to vector<2x8xf32>
    %42 = vector.extract_strided_slice %38 {offsets = [0, 24], sizes = [2, 8], strides = [1, 1]} : vector<2x96xf32> to vector<2x8xf32>
    %43 = tpu.concatenate %39, %40, %41, %42 in 0 : vector<2x8xf32>, vector<2x8xf32>, vector<2x8xf32>, vector<2x8xf32> -> vector<8x8xf32>
    %44 = vector.extract_strided_slice %38 {offsets = [0, 32], sizes = [2, 8], strides = [1, 1]} : vector<2x96xf32> to vector<2x8xf32>
    %45 = vector.extract_strided_slice %38 {offsets = [0, 40], sizes = [2, 8], strides = [1, 1]} : vector<2x96xf32> to vector<2x8xf32>
    %46 = vector.extract_strided_slice %38 {offsets = [0, 48], sizes = [2, 8], strides = [1, 1]} : vector<2x96xf32> to vector<2x8xf32>
    %47 = vector.extract_strided_slice %38 {offsets = [0, 56], sizes = [2, 8], strides = [1, 1]} : vector<2x96xf32> to vector<2x8xf32>
    %48 = tpu.concatenate %44, %45, %46, %47 in 0 : vector<2x8xf32>, vector<2x8xf32>, vector<2x8xf32>, vector<2x8xf32> -> vector<8x8xf32>
    %49 = vector.extract_strided_slice %38 {offsets = [0, 64], sizes = [2, 8], strides = [1, 1]} : vector<2x96xf32> to vector<2x8xf32>
    %50 = vector.extract_strided_slice %38 {offsets = [0, 72], sizes = [2, 8], strides = [1, 1]} : vector<2x96xf32> to vector<2x8xf32>
    %51 = vector.extract_strided_slice %38 {offsets = [0, 80], sizes = [2, 8], strides = [1, 1]} : vector<2x96xf32> to vector<2x8xf32>
    %52 = vector.extract_strided_slice %38 {offsets = [0, 88], sizes = [2, 8], strides = [1, 1]} : vector<2x96xf32> to vector<2x8xf32>
    %53 = tpu.concatenate %49, %50, %51, %52 in 0 : vector<2x8xf32>, vector<2x8xf32>, vector<2x8xf32>, vector<2x8xf32> -> vector<8x8xf32>
    %54 = vector.extract_strided_slice %5 {offsets = [6, 0], sizes = [2, 96], strides = [1, 1]} : vector<16x96xf32> to vector<2x96xf32>
    %55 = vector.extract_strided_slice %54 {offsets = [0, 0], sizes = [2, 8], strides = [1, 1]} : vector<2x96xf32> to vector<2x8xf32>
    %56 = vector.extract_strided_slice %54 {offsets = [0, 8], sizes = [2, 8], strides = [1, 1]} : vector<2x96xf32> to vector<2x8xf32>
    %57 = vector.extract_strided_slice %54 {offsets = [0, 16], sizes = [2, 8], strides = [1, 1]} : vector<2x96xf32> to vector<2x8xf32>
    %58 = vector.extract_strided_slice %54 {offsets = [0, 24], sizes = [2, 8], strides = [1, 1]} : vector<2x96xf32> to vector<2x8xf32>
    %59 = tpu.concatenate %55, %56, %57, %58 in 0 : vector<2x8xf32>, vector<2x8xf32>, vector<2x8xf32>, vector<2x8xf32> -> vector<8x8xf32>
    %60 = vector.extract_strided_slice %54 {offsets = [0, 32], sizes = [2, 8], strides = [1, 1]} : vector<2x96xf32> to vector<2x8xf32>
    %61 = vector.extract_strided_slice %54 {offsets = [0, 40], sizes = [2, 8], strides = [1, 1]} : vector<2x96xf32> to vector<2x8xf32>
    %62 = vector.extract_strided_slice %54 {offsets = [0, 48], sizes = [2, 8], strides = [1, 1]} : vector<2x96xf32> to vector<2x8xf32>
    %63 = vector.extract_strided_slice %54 {offsets = [0, 56], sizes = [2, 8], strides = [1, 1]} : vector<2x96xf32> to vector<2x8xf32>
    %64 = tpu.concatenate %60, %61, %62, %63 in 0 : vector<2x8xf32>, vector<2x8xf32>, vector<2x8xf32>, vector<2x8xf32> -> vector<8x8xf32>
    %65 = vector.extract_strided_slice %54 {offsets = [0, 64], sizes = [2, 8], strides = [1, 1]} : vector<2x96xf32> to vector<2x8xf32>
    %66 = vector.extract_strided_slice %54 {offsets = [0, 72], sizes = [2, 8], strides = [1, 1]} : vector<2x96xf32> to vector<2x8xf32>
    %67 = vector.extract_strided_slice %54 {offsets = [0, 80], sizes = [2, 8], strides = [1, 1]} : vector<2x96xf32> to vector<2x8xf32>
    %68 = vector.extract_strided_slice %54 {offsets = [0, 88], sizes = [2, 8], strides = [1, 1]} : vector<2x96xf32> to vector<2x8xf32>
    %69 = tpu.concatenate %65, %66, %67, %68 in 0 : vector<2x8xf32>, vector<2x8xf32>, vector<2x8xf32>, vector<2x8xf32> -> vector<8x8xf32>
    %70 = vector.extract_strided_slice %5 {offsets = [8, 0], sizes = [2, 96], strides = [1, 1]} : vector<16x96xf32> to vector<2x96xf32>
    %71 = vector.extract_strided_slice %70 {offsets = [0, 0], sizes = [2, 8], strides = [1, 1]} : vector<2x96xf32> to vector<2x8xf32>
    %72 = vector.extract_strided_slice %70 {offsets = [0, 8], sizes = [2, 8], strides = [1, 1]} : vector<2x96xf32> to vector<2x8xf32>
    %73 = vector.extract_strided_slice %70 {offsets = [0, 16], sizes = [2, 8], strides = [1, 1]} : vector<2x96xf32> to vector<2x8xf32>
    %74 = vector.extract_strided_slice %70 {offsets = [0, 24], sizes = [2, 8], strides = [1, 1]} : vector<2x96xf32> to vector<2x8xf32>
    %75 = tpu.concatenate %71, %72, %73, %74 in 0 : vector<2x8xf32>, vector<2x8xf32>, vector<2x8xf32>, vector<2x8xf32> -> vector<8x8xf32>
    %76 = vector.extract_strided_slice %70 {offsets = [0, 32], sizes = [2, 8], strides = [1, 1]} : vector<2x96xf32> to vector<2x8xf32>
    %77 = vector.extract_strided_slice %70 {offsets = [0, 40], sizes = [2, 8], strides = [1, 1]} : vector<2x96xf32> to vector<2x8xf32>
    %78 = vector.extract_strided_slice %70 {offsets = [0, 48], sizes = [2, 8], strides = [1, 1]} : vector<2x96xf32> to vector<2x8xf32>
    %79 = vector.extract_strided_slice %70 {offsets = [0, 56], sizes = [2, 8], strides = [1, 1]} : vector<2x96xf32> to vector<2x8xf32>
    %80 = tpu.concatenate %76, %77, %78, %79 in 0 : vector<2x8xf32>, vector<2x8xf32>, vector<2x8xf32>, vector<2x8xf32> -> vector<8x8xf32>
    %81 = vector.extract_strided_slice %70 {offsets = [0, 64], sizes = [2, 8], strides = [1, 1]} : vector<2x96xf32> to vector<2x8xf32>
    %82 = vector.extract_strided_slice %70 {offsets = [0, 72], sizes = [2, 8], strides = [1, 1]} : vector<2x96xf32> to vector<2x8xf32>
    %83 = vector.extract_strided_slice %70 {offsets = [0, 80], sizes = [2, 8], strides = [1, 1]} : vector<2x96xf32> to vector<2x8xf32>
    %84 = vector.extract_strided_slice %70 {offsets = [0, 88], sizes = [2, 8], strides = [1, 1]} : vector<2x96xf32> to vector<2x8xf32>
    %85 = tpu.concatenate %81, %82, %83, %84 in 0 : vector<2x8xf32>, vector<2x8xf32>, vector<2x8xf32>, vector<2x8xf32> -> vector<8x8xf32>
    %86 = vector.extract_strided_slice %5 {offsets = [10, 0], sizes = [2, 96], strides = [1, 1]} : vector<16x96xf32> to vector<2x96xf32>
    %87 = vector.extract_strided_slice %86 {offsets = [0, 0], sizes = [2, 8], strides = [1, 1]} : vector<2x96xf32> to vector<2x8xf32>
    %88 = vector.extract_strided_slice %86 {offsets = [0, 8], sizes = [2, 8], strides = [1, 1]} : vector<2x96xf32> to vector<2x8xf32>
    %89 = vector.extract_strided_slice %86 {offsets = [0, 16], sizes = [2, 8], strides = [1, 1]} : vector<2x96xf32> to vector<2x8xf32>
    %90 = vector.extract_strided_slice %86 {offsets = [0, 24], sizes = [2, 8], strides = [1, 1]} : vector<2x96xf32> to vector<2x8xf32>
    %91 = tpu.concatenate %87, %88, %89, %90 in 0 : vector<2x8xf32>, vector<2x8xf32>, vector<2x8xf32>, vector<2x8xf32> -> vector<8x8xf32>
    %92 = vector.extract_strided_slice %86 {offsets = [0, 32], sizes = [2, 8], strides = [1, 1]} : vector<2x96xf32> to vector<2x8xf32>
    %93 = vector.extract_strided_slice %86 {offsets = [0, 40], sizes = [2, 8], strides = [1, 1]} : vector<2x96xf32> to vector<2x8xf32>
    %94 = vector.extract_strided_slice %86 {offsets = [0, 48], sizes = [2, 8], strides = [1, 1]} : vector<2x96xf32> to vector<2x8xf32>
    %95 = vector.extract_strided_slice %86 {offsets = [0, 56], sizes = [2, 8], strides = [1, 1]} : vector<2x96xf32> to vector<2x8xf32>
    %96 = tpu.concatenate %92, %93, %94, %95 in 0 : vector<2x8xf32>, vector<2x8xf32>, vector<2x8xf32>, vector<2x8xf32> -> vector<8x8xf32>
    %97 = vector.extract_strided_slice %86 {offsets = [0, 64], sizes = [2, 8], strides = [1, 1]} : vector<2x96xf32> to vector<2x8xf32>
    %98 = vector.extract_strided_slice %86 {offsets = [0, 72], sizes = [2, 8], strides = [1, 1]} : vector<2x96xf32> to vector<2x8xf32>
    %99 = vector.extract_strided_slice %86 {offsets = [0, 80], sizes = [2, 8], strides = [1, 1]} : vector<2x96xf32> to vector<2x8xf32>
    %100 = vector.extract_strided_slice %86 {offsets = [0, 88], sizes = [2, 8], strides = [1, 1]} : vector<2x96xf32> to vector<2x8xf32>
    %101 = tpu.concatenate %97, %98, %99, %100 in 0 : vector<2x8xf32>, vector<2x8xf32>, vector<2x8xf32>, vector<2x8xf32> -> vector<8x8xf32>
    %102 = vector.extract_strided_slice %5 {offsets = [12, 0], sizes = [2, 96], strides = [1, 1]} : vector<16x96xf32> to vector<2x96xf32>
    %103 = vector.extract_strided_slice %102 {offsets = [0, 0], sizes = [2, 8], strides = [1, 1]} : vector<2x96xf32> to vector<2x8xf32>
    %104 = vector.extract_strided_slice %102 {offsets = [0, 8], sizes = [2, 8], strides = [1, 1]} : vector<2x96xf32> to vector<2x8xf32>
    %105 = vector.extract_strided_slice %102 {offsets = [0, 16], sizes = [2, 8], strides = [1, 1]} : vector<2x96xf32> to vector<2x8xf32>
    %106 = vector.extract_strided_slice %102 {offsets = [0, 24], sizes = [2, 8], strides = [1, 1]} : vector<2x96xf32> to vector<2x8xf32>
    %107 = tpu.concatenate %103, %104, %105, %106 in 0 : vector<2x8xf32>, vector<2x8xf32>, vector<2x8xf32>, vector<2x8xf32> -> vector<8x8xf32>
    %108 = vector.extract_strided_slice %102 {offsets = [0, 32], sizes = [2, 8], strides = [1, 1]} : vector<2x96xf32> to vector<2x8xf32>
    %109 = vector.extract_strided_slice %102 {offsets = [0, 40], sizes = [2, 8], strides = [1, 1]} : vector<2x96xf32> to vector<2x8xf32>
    %110 = vector.extract_strided_slice %102 {offsets = [0, 48], sizes = [2, 8], strides = [1, 1]} : vector<2x96xf32> to vector<2x8xf32>
    %111 = vector.extract_strided_slice %102 {offsets = [0, 56], sizes = [2, 8], strides = [1, 1]} : vector<2x96xf32> to vector<2x8xf32>
    %112 = tpu.concatenate %108, %109, %110, %111 in 0 : vector<2x8xf32>, vector<2x8xf32>, vector<2x8xf32>, vector<2x8xf32> -> vector<8x8xf32>
    %113 = vector.extract_strided_slice %102 {offsets = [0, 64], sizes = [2, 8], strides = [1, 1]} : vector<2x96xf32> to vector<2x8xf32>
    %114 = vector.extract_strided_slice %102 {offsets = [0, 72], sizes = [2, 8], strides = [1, 1]} : vector<2x96xf32> to vector<2x8xf32>
    %115 = vector.extract_strided_slice %102 {offsets = [0, 80], sizes = [2, 8], strides = [1, 1]} : vector<2x96xf32> to vector<2x8xf32>
    %116 = vector.extract_strided_slice %102 {offsets = [0, 88], sizes = [2, 8], strides = [1, 1]} : vector<2x96xf32> to vector<2x8xf32>
    %117 = tpu.concatenate %113, %114, %115, %116 in 0 : vector<2x8xf32>, vector<2x8xf32>, vector<2x8xf32>, vector<2x8xf32> -> vector<8x8xf32>
    %118 = vector.extract_strided_slice %5 {offsets = [14, 0], sizes = [2, 96], strides = [1, 1]} : vector<16x96xf32> to vector<2x96xf32>
    %119 = vector.extract_strided_slice %118 {offsets = [0, 0], sizes = [2, 8], strides = [1, 1]} : vector<2x96xf32> to vector<2x8xf32>
    %120 = vector.extract_strided_slice %118 {offsets = [0, 8], sizes = [2, 8], strides = [1, 1]} : vector<2x96xf32> to vector<2x8xf32>
    %121 = vector.extract_strided_slice %118 {offsets = [0, 16], sizes = [2, 8], strides = [1, 1]} : vector<2x96xf32> to vector<2x8xf32>
    %122 = vector.extract_strided_slice %118 {offsets = [0, 24], sizes = [2, 8], strides = [1, 1]} : vector<2x96xf32> to vector<2x8xf32>
    %123 = tpu.concatenate %119, %120, %121, %122 in 0 : vector<2x8xf32>, vector<2x8xf32>, vector<2x8xf32>, vector<2x8xf32> -> vector<8x8xf32>
    %124 = vector.extract_strided_slice %118 {offsets = [0, 32], sizes = [2, 8], strides = [1, 1]} : vector<2x96xf32> to vector<2x8xf32>
    %125 = vector.extract_strided_slice %118 {offsets = [0, 40], sizes = [2, 8], strides = [1, 1]} : vector<2x96xf32> to vector<2x8xf32>
    %126 = vector.extract_strided_slice %118 {offsets = [0, 48], sizes = [2, 8], strides = [1, 1]} : vector<2x96xf32> to vector<2x8xf32>
    %127 = vector.extract_strided_slice %118 {offsets = [0, 56], sizes = [2, 8], strides = [1, 1]} : vector<2x96xf32> to vector<2x8xf32>
    %128 = tpu.concatenate %124, %125, %126, %127 in 0 : vector<2x8xf32>, vector<2x8xf32>, vector<2x8xf32>, vector<2x8xf32> -> vector<8x8xf32>
    %129 = vector.extract_strided_slice %118 {offsets = [0, 64], sizes = [2, 8], strides = [1, 1]} : vector<2x96xf32> to vector<2x8xf32>
    %130 = vector.extract_strided_slice %118 {offsets = [0, 72], sizes = [2, 8], strides = [1, 1]} : vector<2x96xf32> to vector<2x8xf32>
    %131 = vector.extract_strided_slice %118 {offsets = [0, 80], sizes = [2, 8], strides = [1, 1]} : vector<2x96xf32> to vector<2x8xf32>
    %132 = vector.extract_strided_slice %118 {offsets = [0, 88], sizes = [2, 8], strides = [1, 1]} : vector<2x96xf32> to vector<2x8xf32>
    %133 = tpu.concatenate %129, %130, %131, %132 in 0 : vector<2x8xf32>, vector<2x8xf32>, vector<2x8xf32>, vector<2x8xf32> -> vector<8x8xf32>
    %134 = vector.shape_cast %11 : vector<8x8xf32> to vector<1x8x8xf32>
    %135 = vector.shape_cast %27 : vector<8x8xf32> to vector<1x8x8xf32>
    %136 = vector.shape_cast %43 : vector<8x8xf32> to vector<1x8x8xf32>
    %137 = vector.shape_cast %59 : vector<8x8xf32> to vector<1x8x8xf32>
    %138 = vector.shape_cast %75 : vector<8x8xf32> to vector<1x8x8xf32>
    %139 = vector.shape_cast %91 : vector<8x8xf32> to vector<1x8x8xf32>
    %140 = vector.shape_cast %107 : vector<8x8xf32> to vector<1x8x8xf32>
    %141 = vector.shape_cast %123 : vector<8x8xf32> to vector<1x8x8xf32>
    %142 = tpu.concatenate %134, %135, %136, %137, %138, %139, %140, %141 in 0 : vector<1x8x8xf32>, vector<1x8x8xf32>, vector<1x8x8xf32>, vector<1x8x8xf32>, vector<1x8x8xf32>, vector<1x8x8xf32>, vector<1x8x8xf32>, vector<1x8x8xf32> -> vector<8x8x8xf32>
    %143 = vector.shape_cast %16 : vector<8x8xf32> to vector<1x8x8xf32>
    %144 = vector.shape_cast %32 : vector<8x8xf32> to vector<1x8x8xf32>
    %145 = vector.shape_cast %48 : vector<8x8xf32> to vector<1x8x8xf32>
    %146 = vector.shape_cast %64 : vector<8x8xf32> to vector<1x8x8xf32>
    %147 = vector.shape_cast %80 : vector<8x8xf32> to vector<1x8x8xf32>
    %148 = vector.shape_cast %96 : vector<8x8xf32> to vector<1x8x8xf32>
    %149 = vector.shape_cast %112 : vector<8x8xf32> to vector<1x8x8xf32>
    %150 = vector.shape_cast %128 : vector<8x8xf32> to vector<1x8x8xf32>
    %151 = tpu.concatenate %143, %144, %145, %146, %147, %148, %149, %150 in 0 : vector<1x8x8xf32>, vector<1x8x8xf32>, vector<1x8x8xf32>, vector<1x8x8xf32>, vector<1x8x8xf32>, vector<1x8x8xf32>, vector<1x8x8xf32>, vector<1x8x8xf32> -> vector<8x8x8xf32>
    %152 = vector.shape_cast %21 : vector<8x8xf32> to vector<1x8x8xf32>
    %153 = vector.shape_cast %37 : vector<8x8xf32> to vector<1x8x8xf32>
    %154 = vector.shape_cast %53 : vector<8x8xf32> to vector<1x8x8xf32>
    %155 = vector.shape_cast %69 : vector<8x8xf32> to vector<1x8x8xf32>
    %156 = vector.shape_cast %85 : vector<8x8xf32> to vector<1x8x8xf32>
    %157 = vector.shape_cast %101 : vector<8x8xf32> to vector<1x8x8xf32>
    %158 = vector.shape_cast %117 : vector<8x8xf32> to vector<1x8x8xf32>
    %159 = vector.shape_cast %133 : vector<8x8xf32> to vector<1x8x8xf32>
    %160 = tpu.concatenate %152, %153, %154, %155, %156, %157, %158, %159 in 0 : vector<1x8x8xf32>, vector<1x8x8xf32>, vector<1x8x8xf32>, vector<1x8x8xf32>, vector<1x8x8xf32>, vector<1x8x8xf32>, vector<1x8x8xf32>, vector<1x8x8xf32> -> vector<8x8x8xf32>
    "tpu.trace_start"() <{level = 10 : i32, message = "gqd,gkd->gqk"}> : () -> ()
    %cst_5 = arith.constant dense<0.000000e+00> : vector<8x8x8xf32>
    %161 = tpu.matmul %142, %151, %cst_5 {dimension_numbers = #tpu.dot_dimension_numbers<[2], [2], [1], [1], [0, 0, 0, 1, 1, 1], [0], [0]>} : vector<8x8x8xf32>, vector<8x8x8xf32>, vector<8x8x8xf32> -> vector<8x8x8xf32>
    "tpu.trace_stop"() : () -> ()
    %cst_6 = arith.constant dense<0xFF800000> : vector<8x8xf32>
    %162 = vector.multi_reduction <maximumf>, %161, %cst_6 [2] : vector<8x8x8xf32> to vector<8x8xf32>
    %163 = vector.shape_cast %162 : vector<8x8xf32> to vector<8x8x1xf32>
    %164 = vector.broadcast %163 : vector<8x8x1xf32> to vector<8x8x8xf32>
    %165 = arith.subf %161, %164 : vector<8x8x8xf32>
    %166 = math.exp %165 : vector<8x8x8xf32>
    %cst_7 = arith.constant dense<0.000000e+00> : vector<8x8xf32>
    %167 = vector.multi_reduction <add>, %166, %cst_7 [2] : vector<8x8x8xf32> to vector<8x8xf32>
    %168 = vector.shape_cast %167 : vector<8x8xf32> to vector<8x8x1xf32>
    %169 = tpu.reciprocal %168 : vector<8x8x1xf32> -> vector<8x8x1xf32>
    %170 = vector.broadcast %169 : vector<8x8x1xf32> to vector<8x8x8xf32>
    %171 = arith.mulf %166, %170 : vector<8x8x8xf32>
    "tpu.trace_start"() <{level = 10 : i32, message = "gqk,gkd->gqd"}> : () -> ()
    %cst_8 = arith.constant dense<0.000000e+00> : vector<8x8x8xf32>
    %172 = tpu.matmul %171, %160, %cst_8 {dimension_numbers = #tpu.dot_dimension_numbers<[2], [1], [1], [2], [0, 0, 0, 1, 1, 2], [0], [0]>} : vector<8x8x8xf32>, vector<8x8x8xf32>, vector<8x8x8xf32> -> vector<8x8x8xf32>
    "tpu.trace_stop"() : () -> ()
    %173 = vector.extract_strided_slice %172 {offsets = [0, 0, 0], sizes = [1, 8, 8], strides = [1, 1, 1]} : vector<8x8x8xf32> to vector<1x8x8xf32>
    %174 = vector.shape_cast %173 : vector<1x8x8xf32> to vector<8x8xf32>
    %175 = vector.extract_strided_slice %174 {offsets = [0, 0], sizes = [2, 8], strides = [1, 1]} : vector<8x8xf32> to vector<2x8xf32>
    %176 = vector.extract_strided_slice %174 {offsets = [2, 0], sizes = [2, 8], strides = [1, 1]} : vector<8x8xf32> to vector<2x8xf32>
    %177 = vector.extract_strided_slice %174 {offsets = [4, 0], sizes = [2, 8], strides = [1, 1]} : vector<8x8xf32> to vector<2x8xf32>
    %178 = vector.extract_strided_slice %174 {offsets = [6, 0], sizes = [2, 8], strides = [1, 1]} : vector<8x8xf32> to vector<2x8xf32>
    %179 = tpu.concatenate %175, %176, %177, %178 in 1 : vector<2x8xf32>, vector<2x8xf32>, vector<2x8xf32>, vector<2x8xf32> -> vector<2x32xf32>
    %180 = vector.extract_strided_slice %172 {offsets = [1, 0, 0], sizes = [1, 8, 8], strides = [1, 1, 1]} : vector<8x8x8xf32> to vector<1x8x8xf32>
    %181 = vector.shape_cast %180 : vector<1x8x8xf32> to vector<8x8xf32>
    %182 = vector.extract_strided_slice %181 {offsets = [0, 0], sizes = [2, 8], strides = [1, 1]} : vector<8x8xf32> to vector<2x8xf32>
    %183 = vector.extract_strided_slice %181 {offsets = [2, 0], sizes = [2, 8], strides = [1, 1]} : vector<8x8xf32> to vector<2x8xf32>
    %184 = vector.extract_strided_slice %181 {offsets = [4, 0], sizes = [2, 8], strides = [1, 1]} : vector<8x8xf32> to vector<2x8xf32>
    %185 = vector.extract_strided_slice %181 {offsets = [6, 0], sizes = [2, 8], strides = [1, 1]} : vector<8x8xf32> to vector<2x8xf32>
    %186 = tpu.concatenate %182, %183, %184, %185 in 1 : vector<2x8xf32>, vector<2x8xf32>, vector<2x8xf32>, vector<2x8xf32> -> vector<2x32xf32>
    %187 = vector.extract_strided_slice %172 {offsets = [2, 0, 0], sizes = [1, 8, 8], strides = [1, 1, 1]} : vector<8x8x8xf32> to vector<1x8x8xf32>
    %188 = vector.shape_cast %187 : vector<1x8x8xf32> to vector<8x8xf32>
    %189 = vector.extract_strided_slice %188 {offsets = [0, 0], sizes = [2, 8], strides = [1, 1]} : vector<8x8xf32> to vector<2x8xf32>
    %190 = vector.extract_strided_slice %188 {offsets = [2, 0], sizes = [2, 8], strides = [1, 1]} : vector<8x8xf32> to vector<2x8xf32>
    %191 = vector.extract_strided_slice %188 {offsets = [4, 0], sizes = [2, 8], strides = [1, 1]} : vector<8x8xf32> to vector<2x8xf32>
    %192 = vector.extract_strided_slice %188 {offsets = [6, 0], sizes = [2, 8], strides = [1, 1]} : vector<8x8xf32> to vector<2x8xf32>
    %193 = tpu.concatenate %189, %190, %191, %192 in 1 : vector<2x8xf32>, vector<2x8xf32>, vector<2x8xf32>, vector<2x8xf32> -> vector<2x32xf32>
    %194 = vector.extract_strided_slice %172 {offsets = [3, 0, 0], sizes = [1, 8, 8], strides = [1, 1, 1]} : vector<8x8x8xf32> to vector<1x8x8xf32>
    %195 = vector.shape_cast %194 : vector<1x8x8xf32> to vector<8x8xf32>
    %196 = vector.extract_strided_slice %195 {offsets = [0, 0], sizes = [2, 8], strides = [1, 1]} : vector<8x8xf32> to vector<2x8xf32>
    %197 = vector.extract_strided_slice %195 {offsets = [2, 0], sizes = [2, 8], strides = [1, 1]} : vector<8x8xf32> to vector<2x8xf32>
    %198 = vector.extract_strided_slice %195 {offsets = [4, 0], sizes = [2, 8], strides = [1, 1]} : vector<8x8xf32> to vector<2x8xf32>
    %199 = vector.extract_strided_slice %195 {offsets = [6, 0], sizes = [2, 8], strides = [1, 1]} : vector<8x8xf32> to vector<2x8xf32>
    %200 = tpu.concatenate %196, %197, %198, %199 in 1 : vector<2x8xf32>, vector<2x8xf32>, vector<2x8xf32>, vector<2x8xf32> -> vector<2x32xf32>
    %201 = vector.extract_strided_slice %172 {offsets = [4, 0, 0], sizes = [1, 8, 8], strides = [1, 1, 1]} : vector<8x8x8xf32> to vector<1x8x8xf32>
    %202 = vector.shape_cast %201 : vector<1x8x8xf32> to vector<8x8xf32>
    %203 = vector.extract_strided_slice %202 {offsets = [0, 0], sizes = [2, 8], strides = [1, 1]} : vector<8x8xf32> to vector<2x8xf32>
    %204 = vector.extract_strided_slice %202 {offsets = [2, 0], sizes = [2, 8], strides = [1, 1]} : vector<8x8xf32> to vector<2x8xf32>
    %205 = vector.extract_strided_slice %202 {offsets = [4, 0], sizes = [2, 8], strides = [1, 1]} : vector<8x8xf32> to vector<2x8xf32>
    %206 = vector.extract_strided_slice %202 {offsets = [6, 0], sizes = [2, 8], strides = [1, 1]} : vector<8x8xf32> to vector<2x8xf32>
    %207 = tpu.concatenate %203, %204, %205, %206 in 1 : vector<2x8xf32>, vector<2x8xf32>, vector<2x8xf32>, vector<2x8xf32> -> vector<2x32xf32>
    %208 = vector.extract_strided_slice %172 {offsets = [5, 0, 0], sizes = [1, 8, 8], strides = [1, 1, 1]} : vector<8x8x8xf32> to vector<1x8x8xf32>
    %209 = vector.shape_cast %208 : vector<1x8x8xf32> to vector<8x8xf32>
    %210 = vector.extract_strided_slice %209 {offsets = [0, 0], sizes = [2, 8], strides = [1, 1]} : vector<8x8xf32> to vector<2x8xf32>
    %211 = vector.extract_strided_slice %209 {offsets = [2, 0], sizes = [2, 8], strides = [1, 1]} : vector<8x8xf32> to vector<2x8xf32>
    %212 = vector.extract_strided_slice %209 {offsets = [4, 0], sizes = [2, 8], strides = [1, 1]} : vector<8x8xf32> to vector<2x8xf32>
    %213 = vector.extract_strided_slice %209 {offsets = [6, 0], sizes = [2, 8], strides = [1, 1]} : vector<8x8xf32> to vector<2x8xf32>
    %214 = tpu.concatenate %210, %211, %212, %213 in 1 : vector<2x8xf32>, vector<2x8xf32>, vector<2x8xf32>, vector<2x8xf32> -> vector<2x32xf32>
    %215 = vector.extract_strided_slice %172 {offsets = [6, 0, 0], sizes = [1, 8, 8], strides = [1, 1, 1]} : vector<8x8x8xf32> to vector<1x8x8xf32>
    %216 = vector.shape_cast %215 : vector<1x8x8xf32> to vector<8x8xf32>
    %217 = vector.extract_strided_slice %216 {offsets = [0, 0], sizes = [2, 8], strides = [1, 1]} : vector<8x8xf32> to vector<2x8xf32>
    %218 = vector.extract_strided_slice %216 {offsets = [2, 0], sizes = [2, 8], strides = [1, 1]} : vector<8x8xf32> to vector<2x8xf32>
    %219 = vector.extract_strided_slice %216 {offsets = [4, 0], sizes = [2, 8], strides = [1, 1]} : vector<8x8xf32> to vector<2x8xf32>
    %220 = vector.extract_strided_slice %216 {offsets = [6, 0], sizes = [2, 8], strides = [1, 1]} : vector<8x8xf32> to vector<2x8xf32>
    %221 = tpu.concatenate %217, %218, %219, %220 in 1 : vector<2x8xf32>, vector<2x8xf32>, vector<2x8xf32>, vector<2x8xf32> -> vector<2x32xf32>
    %222 = vector.extract_strided_slice %172 {offsets = [7, 0, 0], sizes = [1, 8, 8], strides = [1, 1, 1]} : vector<8x8x8xf32> to vector<1x8x8xf32>
    %223 = vector.shape_cast %222 : vector<1x8x8xf32> to vector<8x8xf32>
    %224 = vector.extract_strided_slice %223 {offsets = [0, 0], sizes = [2, 8], strides = [1, 1]} : vector<8x8xf32> to vector<2x8xf32>
    %225 = vector.extract_strided_slice %223 {offsets = [2, 0], sizes = [2, 8], strides = [1, 1]} : vector<8x8xf32> to vector<2x8xf32>
    %226 = vector.extract_strided_slice %223 {offsets = [4, 0], sizes = [2, 8], strides = [1, 1]} : vector<8x8xf32> to vector<2x8xf32>
    %227 = vector.extract_strided_slice %223 {offsets = [6, 0], sizes = [2, 8], strides = [1, 1]} : vector<8x8xf32> to vector<2x8xf32>
    %228 = tpu.concatenate %224, %225, %226, %227 in 1 : vector<2x8xf32>, vector<2x8xf32>, vector<2x8xf32>, vector<2x8xf32> -> vector<2x32xf32>
    %229 = tpu.concatenate %179, %186, %193, %200, %207, %214, %221, %228 in 0 : vector<2x32xf32>, vector<2x32xf32>, vector<2x32xf32>, vector<2x32xf32>, vector<2x32xf32>, vector<2x32xf32>, vector<2x32xf32>, vector<2x32xf32> -> vector<16x32xf32>
    %c0_9 = arith.constant 0 : index
    %c0_10 = arith.constant 0 : index
    %230 = vector.load %arg4[%c0_9, %c0_10] : memref<32x32xf32, #tpu.memory_space<vmem>>, vector<32x32xf32>
    %cst_11 = arith.constant dense<0.000000e+00> : vector<16x32xf32>
    %231 = tpu.matmul %229, %230, %cst_11 {dimension_numbers = #tpu.dot_dimension_numbers<[1], [0], [0], [1], [0, 0, 1, 1], [], []>} : vector<16x32xf32>, vector<32x32xf32>, vector<16x32xf32> -> vector<16x32xf32>
    %c0_12 = arith.constant 0 : index
    %c0_13 = arith.constant 0 : index
    %232 = vector.load %arg5[%c0_12, %c0_13] : memref<1x32xf32, #tpu.memory_space<vmem>>, vector<1x32xf32>
    %233 = vector.broadcast %232 : vector<1x32xf32> to vector<16x32xf32>
    %234 = arith.addf %231, %233 : vector<16x32xf32>
    %235 = arith.addf %234, %0 : vector<16x32xf32>
    %cst_14 = arith.constant dense<0.000000e+00> : vector<16xf32>
    %236 = vector.multi_reduction <add>, %235, %cst_14 [1] : vector<16x32xf32> to vector<16xf32>
    %237 = vector.shape_cast %236 : vector<16xf32> to vector<16x1xf32>
    %cst_15 = arith.constant 3.200000e+01 : f32
    %238 = vector.broadcast %cst_15 : f32 to vector<16x1xf32>
    %239 = arith.divf %237, %238 : vector<16x1xf32>
    %240 = vector.broadcast %239 : vector<16x1xf32> to vector<16x32xf32>
    %241 = arith.subf %235, %240 : vector<16x32xf32>
    %242 = arith.mulf %241, %241 : vector<16x32xf32>
    %cst_16 = arith.constant dense<0.000000e+00> : vector<16xf32>
    %243 = vector.multi_reduction <add>, %242, %cst_16 [1] : vector<16x32xf32> to vector<16xf32>
    %244 = vector.shape_cast %243 : vector<16xf32> to vector<16x1xf32>
    %cst_17 = arith.constant 3.200000e+01 : f32
    %245 = vector.broadcast %cst_17 : f32 to vector<16x1xf32>
    %246 = arith.divf %244, %245 : vector<16x1xf32>
    %247 = vector.broadcast %239 : vector<16x1xf32> to vector<16x32xf32>
    %248 = arith.subf %235, %247 : vector<16x32xf32>
    %cst_18 = arith.constant 9.99999974E-6 : f32
    %249 = vector.broadcast %cst_18 : f32 to vector<16x1xf32>
    %250 = arith.addf %246, %249 : vector<16x1xf32>
    %251 = math.rsqrt %250 : vector<16x1xf32>
    %252 = vector.broadcast %251 : vector<16x1xf32> to vector<16x32xf32>
    %253 = arith.mulf %248, %252 : vector<16x32xf32>
    %c0_19 = arith.constant 0 : index
    %c0_20 = arith.constant 0 : index
    %254 = vector.load %arg6[%c0_19, %c0_20] : memref<1x32xf32, #tpu.memory_space<vmem>>, vector<1x32xf32>
    %255 = vector.broadcast %254 : vector<1x32xf32> to vector<16x32xf32>
    %256 = arith.mulf %253, %255 : vector<16x32xf32>
    %c0_21 = arith.constant 0 : index
    %c0_22 = arith.constant 0 : index
    %257 = vector.load %arg7[%c0_21, %c0_22] : memref<1x32xf32, #tpu.memory_space<vmem>>, vector<1x32xf32>
    %258 = vector.broadcast %257 : vector<1x32xf32> to vector<16x32xf32>
    %259 = arith.addf %256, %258 : vector<16x32xf32>
    %c0_23 = arith.constant 0 : index
    %c0_24 = arith.constant 0 : index
    %260 = vector.load %arg8[%c0_23, %c0_24] : memref<16x32xf32, #tpu.memory_space<vmem>>, vector<16x32xf32>
    tpu.vector_store %arg8[%c0_23, %c0_24], %259 {strides = array<i32>} : memref<16x32xf32, #tpu.memory_space<vmem>>, vector<16x32xf32>,
    return
  }
  func.func @transform_0(%arg0: i32) -> (i32, i32) {
    %c0_i32 = arith.constant 0 : i32
    %c0_i32_0 = arith.constant 0 : i32
    return %arg0, %c0_i32 : i32, i32
  }
  func.func @transform_1(%arg0: i32) -> (i32, i32) {
    %c0_i32 = arith.constant 0 : i32
    %c0_i32_0 = arith.constant 0 : i32
    %c0_i32_1 = arith.constant 0 : i32
    return %c0_i32, %c0_i32_0 : i32, i32
  }
  func.func @transform_2(%arg0: i32) -> (i32, i32) {
    %c0_i32 = arith.constant 0 : i32
    %c0_i32_0 = arith.constant 0 : i32
    %c0_i32_1 = arith.constant 0 : i32
    return %c0_i32, %c0_i32_0 : i32, i32
  }
  func.func @transform_3(%arg0: i32) -> (i32, i32) {
    %c0_i32 = arith.constant 0 : i32
    %c0_i32_0 = arith.constant 0 : i32
    %c0_i32_1 = arith.constant 0 : i32
    return %c0_i32, %c0_i32_0 : i32, i32
  }
  func.func @transform_4(%arg0: i32) -> (i32, i32) {
    %c0_i32 = arith.constant 0 : i32
    %c0_i32_0 = arith.constant 0 : i32
    %c0_i32_1 = arith.constant 0 : i32
    return %c0_i32, %c0_i32_0 : i32, i32
  }
  func.func @transform_5(%arg0: i32) -> (i32, i32) {
    %c0_i32 = arith.constant 0 : i32
    %c0_i32_0 = arith.constant 0 : i32
    %c0_i32_1 = arith.constant 0 : i32
    return %c0_i32, %c0_i32_0 : i32, i32
  }
  func.func @transform_6(%arg0: i32) -> (i32, i32) {
    %c0_i32 = arith.constant 0 : i32
    %c0_i32_0 = arith.constant 0 : i32
    %c0_i32_1 = arith.constant 0 : i32
    return %c0_i32, %c0_i32_0 : i32, i32
  }
  func.func @transform_7(%arg0: i32) -> (i32, i32) {
    %c0_i32 = arith.constant 0 : i32
    %c0_i32_0 = arith.constant 0 : i32
    return %arg0, %c0_i32 : i32, i32
  }
}

</mosaic_0001>

<llo_original>
// kernel: tpu_custom_call.1
$region0: #{tpu_custom_call.1}
  #allocation0 [shape = 'u32[]', space=smem, size = 0x4, offset = 0x4, fixed_abs, tag = 'smem constant byte address 0x4 - core index']
  #allocation1 [shape = 'u32[144,128]{1,0:T(1,128)}', space=vmem, size = 0x12000, scoped, tag = 'internal scratch']
  %s0 = inlined_call_operand.hbm [shape: f32[16,32], index: 0, kind: input, shape index: {}]
  %s1 = inlined_call_operand.hbm [shape: f32[32,96], index: 1, kind: input, shape index: {}]
  %s2 = inlined_call_operand.vmem [shape: f32[1,96], index: 2, kind: input, shape index: {}]
  %s3 = inlined_call_operand.hbm [shape: f32[32,32], index: 3, kind: input, shape index: {}]
  %s4 = inlined_call_operand.vmem [shape: f32[1,32], index: 4, kind: input, shape index: {}]
  %s5 = inlined_call_operand.vmem [shape: f32[1,32], index: 5, kind: input, shape index: {}]
  %s6 = inlined_call_operand.vmem [shape: f32[1,32], index: 6, kind: input, shape index: {}]
  %s7 = inlined_call_operand.hbm [shape: f32[16,32], index: 7, kind: output, shape index: {}]
  %s8 = sld [smem:[#allocation0]]
  $region50: #{tpu_custom_call.1} parent=0
    _
  %s10 = ssub.s32 1, %s8
  %s11 = scalar_select 0, %s10, %s8
  $region1: #{tpu_custom_call.1} parent=0
    #allocation2 [shape = 'u8[8192]{0}', space=vmem, size = 0x2000, scoped, tag = 'input window, operand 0, single buffered']
    #allocation3 [shape = 's32[1]{0}', space=sflag, size = 0x4, scoped, tag = 'scoped memory for tpu_custom_call.1']
    #allocation4 [shape = 's32[1]{0}', space=sflag, size = 0x4, scoped, tag = 'scoped memory for tpu_custom_call.1']
    #allocation5 [shape = 'u8[16384]{0}', space=vmem, size = 0x4000, scoped, tag = 'input window, operand 1, single buffered']
    #allocation6 [shape = 's32[1]{0}', space=sflag, size = 0x4, scoped, tag = 'scoped memory for tpu_custom_call.1']
    #allocation7 [shape = 'u8[16384]{0}', space=vmem, size = 0x4000, scoped, tag = 'input window, operand 3, single buffered']
    #allocation8 [shape = 'u8[8192]{0}', space=vmem, size = 0x2000, scoped, tag = 'output window, operand 0, single buffered']
    %12 = vsyncpa [#allocation3], 0
    %13 = vsyncpa [#allocation6], 0
    %14 = vsyncpa [#allocation4], 0
    // Predicated region
    $region2: #{tpu_custom_call.1} parent=1 // pred_check
      _
    $region3: #{tpu_custom_call.1} parent=1 // pred_check_branch
      %16 = sbr.rel (0) target = $region5
    $region4: #{tpu_custom_call.1} parent=1 // pred_region
      %s18 = ssub.s32 256, 256
      %19 = vsyncadd [#allocation3], %s18
      %s20 = sshll.u32 [#allocation2], 4
      %s21 = int_to_ptr.vmem [resolvable:$true] %s20
      %26 = dma.hbm_to_vmem [thread:$0]  %s0, 256, %s21, [#allocation3], 128, 128, 8
    $region5: #{tpu_custom_call.1} parent=1 // pred_fallthru
      _
    // Predicated region
    $region6: #{tpu_custom_call.1} parent=1 // pred_check
      _
    $region7: #{tpu_custom_call.1} parent=1 // pred_check_branch
      %28 = sbr.rel (0) target = $region9
    $region8: #{tpu_custom_call.1} parent=1 // pred_region
      %s30 = ssub.s32 512, 512
      %31 = vsyncadd [#allocation6], %s30
      %s32 = sshll.u32 [#allocation5], 4
      %s33 = int_to_ptr.vmem [resolvable:$true] %s32
      %38 = dma.hbm_to_vmem [thread:$0]  %s1, 512, %s33, [#allocation6], 128, 128, 8
    $region9: #{tpu_custom_call.1} parent=1 // pred_fallthru
      _
    // Predicated region
    $region10: #{tpu_custom_call.1} parent=1 // pred_check
      _
    $region11: #{tpu_custom_call.1} parent=1 // pred_check_branch
      %40 = sbr.rel (0) target = $region13
    $region12: #{tpu_custom_call.1} parent=1 // pred_region
      _
    $region13: #{tpu_custom_call.1} parent=1 // pred_fallthru
      _
    // Predicated region
    $region14: #{tpu_custom_call.1} parent=1 // pred_check
      _
    $region15: #{tpu_custom_call.1} parent=1 // pred_check_branch
      %42 = sbr.rel (0) target = $region17
    $region16: #{tpu_custom_call.1} parent=1 // pred_region
      %s44 = ssub.s32 512, 512
      %45 = vsyncadd [#allocation6], %s44
      %s46 = sshll.u32 [#allocation7], 4
      %s47 = int_to_ptr.vmem [resolvable:$true] %s46
      %52 = dma.hbm_to_vmem [thread:$0]  %s3, 512, %s47, [#allocation6], 128, 128, 8
    $region17: #{tpu_custom_call.1} parent=1 // pred_fallthru
      _
    // Predicated region
    $region18: #{tpu_custom_call.1} parent=1 // pred_check
      _
    $region19: #{tpu_custom_call.1} parent=1 // pred_check_branch
      %54 = sbr.rel (0) target = $region21
    $region20: #{tpu_custom_call.1} parent=1 // pred_region
      _
    $region21: #{tpu_custom_call.1} parent=1 // pred_fallthru
      _
    // Predicated region
    $region22: #{tpu_custom_call.1} parent=1 // pred_check
      _
    $region23: #{tpu_custom_call.1} parent=1 // pred_check_branch
      %56 = sbr.rel (0) target = $region25
    $region24: #{tpu_custom_call.1} parent=1 // pred_region
      _
    $region25: #{tpu_custom_call.1} parent=1 // pred_fallthru
      _
    // Predicated region
    $region26: #{tpu_custom_call.1} parent=1 // pred_check
      _
    $region27: #{tpu_custom_call.1} parent=1 // pred_check_branch
      %58 = sbr.rel (0) target = $region29
    $region28: #{tpu_custom_call.1} parent=1 // pred_region
      _
    $region29: #{tpu_custom_call.1} parent=1 // pred_fallthru
      _
    // Predicated region
    $region30: #{tpu_custom_call.1} parent=1 // pred_check
      _
    $region31: #{tpu_custom_call.1} parent=1 // pred_check_branch
      %60 = sbr.rel (0) target = $region33
    $region32: #{tpu_custom_call.1} parent=1 // pred_region
      %61 = dma.done [#allocation3], 256
    $region33: #{tpu_custom_call.1} parent=1 // pred_fallthru
      _
    // Predicated region
    $region34: #{tpu_custom_call.1} parent=1 // pred_check
      _
    $region35: #{tpu_custom_call.1} parent=1 // pred_check_branch
      %63 = sbr.rel (0) target = $region37
    $region36: #{tpu_custom_call.1} parent=1 // pred_region
      %64 = dma.done [#allocation6], 512
    $region37: #{tpu_custom_call.1} parent=1 // pred_fallthru
      _
    // Predicated region
    $region38: #{tpu_custom_call.1} parent=1 // pred_check
      _
    $region39: #{tpu_custom_call.1} parent=1 // pred_check_branch
      %66 = sbr.rel (0) target = $region41
    $region40: #{tpu_custom_call.1} parent=1 // pred_region
      %67 = dma.done [#allocation6], 512
    $region41: #{tpu_custom_call.1} parent=1 // pred_fallthru
      _
    %v68 = vld [vmem:[#allocation2] sm:$0xff]
    %v69 = vld [vmem:[#allocation2 + $0x8] sm:$0xff]
    %v70 = vld [vmem:[#allocation5] sm:$0xff]
    %v71 = vld [vmem:[#allocation5 + $0x8] sm:$0xff]
    %v72 = vld [vmem:[#allocation5 + $0x10] sm:$0xff]
    %v73 = vld [vmem:[#allocation5 + $0x18] sm:$0xff]
    %v74 = vld [vmem:[%s2] sm:$0x1]
    %v76 = vlaneseq
    %v77 = vshrl.u32 %v76, 7
    %v78 = vsub.s32 0, %v77
    %v79 = vrot.slane %v74, %v78
    %vm81 = vcmask 261120
    %v83 = vsel %vm81, %v68, 0
    %v86 = vsel %vm81, %v69, 0
    %88 = vmatprep.subr.mxu0 0.0
    %89 = vmatpush1.msra.mxu0 %v70
    %90 = vmatprep.subr.mxu0 0.0
    %91 = vmatpush1.msra.mxu0 %v71
    %92 = vmatprep.subr.mxu0 0.0
    %93 = vmatpush1.msra.mxu0 %v72
    %94 = vmatprep.subr.mxu0 0.0
    %95 = vmatpush1.msra.mxu0 %v73
    %96 = vmatprep.subr.mxu0 0.0
    %97 = vmatpush1.msra.mxu0 0.0
    %98 = vmatprep.subr.mxu0 0.0
    %99 = vmatpush1.msra.mxu0 0.0
    %100 = vmatprep.subr.mxu0 0.0
    %101 = vmatpush1.msra.mxu0 0.0
    %102 = vmatprep.subr.mxu0 0.0
    %103 = vmatpush1.msra.mxu0 0.0
    %104 = vmatprep.subr.mxu0 0.0
    %105 = vmatpush1.msra.mxu0 0.0
    %106 = vmatprep.subr.mxu0 0.0
    %107 = vmatpush1.msra.mxu0 0.0
    %108 = vmatprep.subr.mxu0 0.0
    %109 = vmatpush1.msra.mxu0 0.0
    %110 = vmatprep.subr.mxu0 0.0
    %111 = vmatpush1.msra.mxu0 0.0
    %112 = vmatprep.subr.mxu0 0.0
    %113 = vmatpush1.msra.mxu0 0.0
    %114 = vmatprep.subr.mxu0 0.0
    %115 = vmatpush1.msra.mxu0 0.0
    %116 = vmatprep.subr.mxu0 0.0
    %117 = vmatpush1.msra.mxu0 0.0
    %118 = vmatprep.subr.mxu0 0.0
    %119 = vmatpush1.msra.mxu0 0.0
    %120 = vmatprep.subr.mxu0 0.0
    %121 = vmatpush1.msra.mxu0 0.0
    %122 = vmatprep.subr.mxu0 0.0
    %123 = vmatpush1.msra.mxu0 0.0
    %124 = vmatprep.subr.mxu0 0.0
    %125 = vmatpush1.msra.mxu0 0.0
    %126 = vmatprep.subr.mxu0 0.0
    %127 = vmatpush1.msra.mxu0 0.0
    %128 = vmatprep.subr.mxu0 0.0
    %129 = vmatpush1.msra.mxu0 0.0
    %130 = vmatprep.subr.mxu0 0.0
    %131 = vmatpush1.msra.mxu0 0.0
    %132 = vmatprep.subr.mxu0 0.0
    %133 = vmatpush1.msra.mxu0 0.0
    %134 = vmatprep.subr.mxu0 0.0
    %135 = vmatpush1.msra.mxu0 0.0
    %136 = vmatprep.subr.mxu0 0.0
    %137 = vmatpush1.msra.mxu0 0.0
    %138 = vmatprep.subr.mxu0 0.0
    %139 = vmatpush1.msra.mxu0 0.0
    %140 = vmatprep.subr.mxu0 0.0
    %141 = vmatpush1.msra.mxu0 0.0
    %142 = vmatprep.subr.mxu0 0.0
    %143 = vmatpush1.msra.mxu0 0.0
    %144 = vmatprep.subr.mxu0 0.0
    %145 = vmatpush1.msra.mxu0 0.0
    %146 = vmatprep.subr.mxu0 0.0
    %147 = vmatpush1.msra.mxu0 0.0
    %148 = vmatprep.subr.mxu0 0.0
    %149 = vmatpush1.msra.mxu0 0.0
    %150 = vmatprep.subr.mxu0 0.0
    %151 = vmatpush1.msra.mxu0 0.0
    %152 = vmatprep.mubr.f32.mxu0 0.0
    %153 = vmatmul.mubr.f32.gmra.mrb[0].mxu0 %v83
    %v154 = vpop.f32.mrb[0].mxu0
    %v155 = vadd.f32 %v79, %v154
    %v156 = vpop.f32.mrb[0].mxu0
    %157 = vmatprep.mubr.f32.mxu0 0.0
    %158 = vmatmul.mubr.f32.gmra.mrb[0].mxu0 %v86
    %v159 = vpop.f32.mrb[0].mxu0
    %v160 = vadd.f32 %v79, %v159
    %v161 = vpop.f32.mrb[0].mxu0
    %162 = vdwg.mxu0
    %v164 = vrot.slane %v155, 6
    %165 = vrot.lane.b32.xlu0 %v164, 120
    %v166 = vpop.permute.xlu0 %165
    %v168 = vrot.slane %v155, 4
    %169 = vrot.lane.b32.xlu0 %v168, 112
    %v170 = vpop.permute.xlu0 %169
    %v172 = vrot.slane %v155, 2
    %173 = vrot.lane.b32.xlu0 %v172, 104
    %v174 = vpop.permute.xlu0 %173
    %vm176 = vcmask 1041408
    %v177 = vsel %vm176, %v155, %v166
    %vm178 = vcmask 1043456
    %v179 = vsel %vm178, %v177, %v170
    %vm180 = vcmask 1045504
    %v181 = vsel %vm180, %v179, %v174
    %183 = vrot.lane.b32.xlu0 %v155, 120
    %v184 = vpop.permute.xlu0 %183
    %186 = vrot.lane.b32.xlu0 %v164, 112
    %v187 = vpop.permute.xlu0 %186
    %189 = vrot.lane.b32.xlu0 %v168, 104
    %v190 = vpop.permute.xlu0 %189
    %v192 = vsel %vm176, %v172, %v184
    %v193 = vsel %vm178, %v192, %v187
    %v194 = vsel %vm180, %v193, %v190
    %196 = vrot.lane.b32.xlu0 %v172, 120
    %v197 = vpop.permute.xlu0 %196
    %199 = vrot.lane.b32.xlu0 %v155, 112
    %v200 = vpop.permute.xlu0 %199
    %202 = vrot.lane.b32.xlu0 %v164, 104
    %v203 = vpop.permute.xlu0 %202
    %v205 = vsel %vm176, %v168, %v197
    %v206 = vsel %vm178, %v205, %v200
    %v207 = vsel %vm180, %v206, %v203
    %209 = vrot.lane.b32.xlu0 %v168, 120
    %v210 = vpop.permute.xlu0 %209
    %212 = vrot.lane.b32.xlu0 %v172, 112
    %v213 = vpop.permute.xlu0 %212
    %215 = vrot.lane.b32.xlu0 %v155, 104
    %v216 = vpop.permute.xlu0 %215
    %v218 = vsel %vm176, %v164, %v210
    %v219 = vsel %vm178, %v218, %v213
    %v220 = vsel %vm180, %v219, %v216
    %v222 = vrot.slane %v160, 6
    %223 = vrot.lane.b32.xlu0 %v222, 120
    %v224 = vpop.permute.xlu0 %223
    %v226 = vrot.slane %v160, 4
    %227 = vrot.lane.b32.xlu0 %v226, 112
    %v228 = vpop.permute.xlu0 %227
    %v230 = vrot.slane %v160, 2
    %231 = vrot.lane.b32.xlu0 %v230, 104
    %v232 = vpop.permute.xlu0 %231
    %v234 = vsel %vm176, %v160, %v224
    %v235 = vsel %vm178, %v234, %v228
    %v236 = vsel %vm180, %v235, %v232
    %238 = vrot.lane.b32.xlu0 %v160, 120
    %v239 = vpop.permute.xlu0 %238
    %241 = vrot.lane.b32.xlu0 %v222, 112
    %v242 = vpop.permute.xlu0 %241
    %244 = vrot.lane.b32.xlu0 %v226, 104
    %v245 = vpop.permute.xlu0 %244
    %v247 = vsel %vm176, %v230, %v239
    %v248 = vsel %vm178, %v247, %v242
    %v249 = vsel %vm180, %v248, %v245
    %251 = vrot.lane.b32.xlu0 %v230, 120
    %v252 = vpop.permute.xlu0 %251
    %254 = vrot.lane.b32.xlu0 %v160, 112
    %v255 = vpop.permute.xlu0 %254
    %257 = vrot.lane.b32.xlu0 %v222, 104
    %v258 = vpop.permute.xlu0 %257
    %v260 = vsel %vm176, %v226, %v252
    %v261 = vsel %vm178, %v260, %v255
    %v262 = vsel %vm180, %v261, %v258
    %264 = vrot.lane.b32.xlu0 %v226, 120
    %v265 = vpop.permute.xlu0 %264
    %267 = vrot.lane.b32.xlu0 %v230, 112
    %v268 = vpop.permute.xlu0 %267
    %270 = vrot.lane.b32.xlu0 %v160, 104
    %v271 = vpop.permute.xlu0 %270
    %v273 = vsel %vm176, %v222, %v265
    %v274 = vsel %vm178, %v273, %v268
    %v275 = vsel %vm180, %v274, %v271
    %277 = vrot.lane.b32.xlu0 %v181, 96
    %v278 = vpop.permute.xlu0 %277
    %vm279 = vcmask 64512
    %v280 = vsel %vm279, %v181, 0
    %v282 = vsel %vm279, %v278, 0
    %284 = vmatprep.subr.mxu0 0.0
    %285 = vmatpush1.xpose.msra.mxu0 %v282
    %286 = vmatprep.subr.mxu0 0.0
    %287 = vmatpush1.xpose.msra.mxu0 0.0
    %288 = vmatprep.subr.mxu0 0.0
    %289 = vmatpush1.xpose.msra.mxu0 0.0
    %290 = vmatprep.subr.mxu0 0.0
    %291 = vmatpush1.xpose.msra.mxu0 0.0
    %292 = vmatprep.subr.mxu0 0.0
    %293 = vmatpush1.xpose.msra.mxu0 0.0
    %294 = vmatprep.subr.mxu0 0.0
    %295 = vmatpush1.xpose.msra.mxu0 0.0
    %296 = vmatprep.subr.mxu0 0.0
    %297 = vmatpush1.xpose.msra.mxu0 0.0
    %298 = vmatprep.subr.mxu0 0.0
    %299 = vmatpush1.xpose.msra.mxu0 0.0
    %300 = vmatprep.subr.mxu0 0.0
    %301 = vmatpush1.xpose.msra.mxu0 0.0
    %302 = vmatprep.subr.mxu0 0.0
    %303 = vmatpush1.xpose.msra.mxu0 0.0
    %304 = vmatprep.subr.mxu0 0.0
    %305 = vmatpush1.xpose.msra.mxu0 0.0
    %306 = vmatprep.subr.mxu0 0.0
    %307 = vmatpush1.xpose.msra.mxu0 0.0
    %308 = vmatprep.subr.mxu0 0.0
    %309 = vmatpush1.xpose.msra.mxu0 0.0
    %310 = vmatprep.subr.mxu0 0.0
    %311 = vmatpush1.xpose.msra.mxu0 0.0
    %312 = vmatprep.subr.mxu0 0.0
    %313 = vmatpush1.xpose.msra.mxu0 0.0
    %314 = vmatprep.subr.mxu0 0.0
    %315 = vmatpush1.xpose.msra.mxu0 0.0
    %316 = vmatprep.subr.mxu0 0.0
    %317 = vmatpush1.xpose.msra.mxu0 0.0
    %318 = vmatprep.subr.mxu0 0.0
    %319 = vmatpush1.xpose.msra.mxu0 0.0
    %320 = vmatprep.subr.mxu0 0.0
    %321 = vmatpush1.xpose.msra.mxu0 0.0
    %322 = vmatprep.subr.mxu0 0.0
    %323 = vmatpush1.xpose.msra.mxu0 0.0
    %324 = vmatprep.subr.mxu0 0.0
    %325 = vmatpush1.xpose.msra.mxu0 0.0
    %326 = vmatprep.subr.mxu0 0.0
    %327 = vmatpush1.xpose.msra.mxu0 0.0
    %328 = vmatprep.subr.mxu0 0.0
    %329 = vmatpush1.xpose.msra.mxu0 0.0
    %330 = vmatprep.subr.mxu0 0.0
    %331 = vmatpush1.xpose.msra.mxu0 0.0
    %332 = vmatprep.subr.mxu0 0.0
    %333 = vmatpush1.xpose.msra.mxu0 0.0
    %334 = vmatprep.subr.mxu0 0.0
    %335 = vmatpush1.xpose.msra.mxu0 0.0
    %336 = vmatprep.subr.mxu0 0.0
    %337 = vmatpush1.xpose.msra.mxu0 0.0
    %338 = vmatprep.subr.mxu0 0.0
    %339 = vmatpush1.xpose.msra.mxu0 0.0
    %340 = vmatprep.subr.mxu0 0.0
    %341 = vmatpush1.xpose.msra.mxu0 0.0
    %342 = vmatprep.subr.mxu0 0.0
    %343 = vmatpush1.xpose.msra.mxu0 0.0
    %344 = vmatprep.subr.mxu0 0.0
    %345 = vmatpush1.xpose.msra.mxu0 0.0
    %346 = vmatprep.subr.mxu0 0.0
    %347 = vmatpush1.xpose.msra.mxu0 0.0
    %348 = vmatprep.mubr.f32.mxu0 0.0
    %349 = vmatmul.mubr.f32.gmra.mrb[0].mxu0 %v280
    %v350 = vpop.f32.mrb[0].mxu0
    %v351 = vadd.f32 0.0, %v350
    %v352 = vpop.f32.mrb[0].mxu0
    %353 = vdwg.mxu0
    %355 = vrot.lane.b32.xlu0 %v194, 96
    %v356 = vpop.permute.xlu0 %355
    %v357 = vsel %vm279, %v194, 0
    %v359 = vsel %vm279, %v356, 0
    %361 = vmatprep.subr.mxu0 0.0
    %362 = vmatpush1.xpose.msra.mxu0 %v359
    %363 = vmatprep.subr.mxu0 0.0
    %364 = vmatpush1.xpose.msra.mxu0 0.0
    %365 = vmatprep.subr.mxu0 0.0
    %366 = vmatpush1.xpose.msra.mxu0 0.0
    %367 = vmatprep.subr.mxu0 0.0
    %368 = vmatpush1.xpose.msra.mxu0 0.0
    %369 = vmatprep.subr.mxu0 0.0
    %370 = vmatpush1.xpose.msra.mxu0 0.0
    %371 = vmatprep.subr.mxu0 0.0
    %372 = vmatpush1.xpose.msra.mxu0 0.0
    %373 = vmatprep.subr.mxu0 0.0
    %374 = vmatpush1.xpose.msra.mxu0 0.0
    %375 = vmatprep.subr.mxu0 0.0
    %376 = vmatpush1.xpose.msra.mxu0 0.0
    %377 = vmatprep.subr.mxu0 0.0
    %378 = vmatpush1.xpose.msra.mxu0 0.0
    %379 = vmatprep.subr.mxu0 0.0
    %380 = vmatpush1.xpose.msra.mxu0 0.0
    %381 = vmatprep.subr.mxu0 0.0
    %382 = vmatpush1.xpose.msra.mxu0 0.0
    %383 = vmatprep.subr.mxu0 0.0
    %384 = vmatpush1.xpose.msra.mxu0 0.0
    %385 = vmatprep.subr.mxu0 0.0
    %386 = vmatpush1.xpose.msra.mxu0 0.0
    %387 = vmatprep.subr.mxu0 0.0
    %388 = vmatpush1.xpose.msra.mxu0 0.0
    %389 = vmatprep.subr.mxu0 0.0
    %390 = vmatpush1.xpose.msra.mxu0 0.0
    %391 = vmatprep.subr.mxu0 0.0
    %392 = vmatpush1.xpose.msra.mxu0 0.0
    %393 = vmatprep.subr.mxu0 0.0
    %394 = vmatpush1.xpose.msra.mxu0 0.0
    %395 = vmatprep.subr.mxu0 0.0
    %396 = vmatpush1.xpose.msra.mxu0 0.0
    %397 = vmatprep.subr.mxu0 0.0
    %398 = vmatpush1.xpose.msra.mxu0 0.0
    %399 = vmatprep.subr.mxu0 0.0
    %400 = vmatpush1.xpose.msra.mxu0 0.0
    %401 = vmatprep.subr.mxu0 0.0
    %402 = vmatpush1.xpose.msra.mxu0 0.0
    %403 = vmatprep.subr.mxu0 0.0
    %404 = vmatpush1.xpose.msra.mxu0 0.0
    %405 = vmatprep.subr.mxu0 0.0
    %406 = vmatpush1.xpose.msra.mxu0 0.0
    %407 = vmatprep.subr.mxu0 0.0
    %408 = vmatpush1.xpose.msra.mxu0 0.0
    %409 = vmatprep.subr.mxu0 0.0
    %410 = vmatpush1.xpose.msra.mxu0 0.0
    %411 = vmatprep.subr.mxu0 0.0
    %412 = vmatpush1.xpose.msra.mxu0 0.0
    %413 = vmatprep.subr.mxu0 0.0
    %414 = vmatpush1.xpose.msra.mxu0 0.0
    %415 = vmatprep.subr.mxu0 0.0
    %416 = vmatpush1.xpose.msra.mxu0 0.0
    %417 = vmatprep.subr.mxu0 0.0
    %418 = vmatpush1.xpose.msra.mxu0 0.0
    %419 = vmatprep.subr.mxu0 0.0
    %420 = vmatpush1.xpose.msra.mxu0 0.0
    %421 = vmatprep.subr.mxu0 0.0
    %422 = vmatpush1.xpose.msra.mxu0 0.0
    %423 = vmatprep.subr.mxu0 0.0
    %424 = vmatpush1.xpose.msra.mxu0 0.0
    %425 = vmatprep.mubr.f32.mxu0 0.0
    %426 = vmatmul.mubr.f32.gmra.mrb[0].mxu0 %v357
    %v427 = vpop.f32.mrb[0].mxu0
    %v428 = vadd.f32 0.0, %v427
    %v429 = vpop.f32.mrb[0].mxu0
    %430 = vdwg.mxu0
    %432 = vrot.lane.b32.xlu0 %v207, 96
    %v433 = vpop.permute.xlu0 %432
    %v434 = vsel %vm279, %v207, 0
    %v436 = vsel %vm279, %v433, 0
    %438 = vmatprep.subr.mxu0 0.0
    %439 = vmatpush1.xpose.msra.mxu0 %v436
    %440 = vmatprep.subr.mxu0 0.0
    %441 = vmatpush1.xpose.msra.mxu0 0.0
    %442 = vmatprep.subr.mxu0 0.0
    %443 = vmatpush1.xpose.msra.mxu0 0.0
    %444 = vmatprep.subr.mxu0 0.0
    %445 = vmatpush1.xpose.msra.mxu0 0.0
    %446 = vmatprep.subr.mxu0 0.0
    %447 = vmatpush1.xpose.msra.mxu0 0.0
    %448 = vmatprep.subr.mxu0 0.0
    %449 = vmatpush1.xpose.msra.mxu0 0.0
    %450 = vmatprep.subr.mxu0 0.0
    %451 = vmatpush1.xpose.msra.mxu0 0.0
    %452 = vmatprep.subr.mxu0 0.0
    %453 = vmatpush1.xpose.msra.mxu0 0.0
    %454 = vmatprep.subr.mxu0 0.0
    %455 = vmatpush1.xpose.msra.mxu0 0.0
    %456 = vmatprep.subr.mxu0 0.0
    %457 = vmatpush1.xpose.msra.mxu0 0.0
    %458 = vmatprep.subr.mxu0 0.0
    %459 = vmatpush1.xpose.msra.mxu0 0.0
    %460 = vmatprep.subr.mxu0 0.0
    %461 = vmatpush1.xpose.msra.mxu0 0.0
    %462 = vmatprep.subr.mxu0 0.0
    %463 = vmatpush1.xpose.msra.mxu0 0.0
    %464 = vmatprep.subr.mxu0 0.0
    %465 = vmatpush1.xpose.msra.mxu0 0.0
    %466 = vmatprep.subr.mxu0 0.0
    %467 = vmatpush1.xpose.msra.mxu0 0.0
    %468 = vmatprep.subr.mxu0 0.0
    %469 = vmatpush1.xpose.msra.mxu0 0.0
    %470 = vmatprep.subr.mxu0 0.0
    %471 = vmatpush1.xpose.msra.mxu0 0.0
    %472 = vmatprep.subr.mxu0 0.0
    %473 = vmatpush1.xpose.msra.mxu0 0.0
    %474 = vmatprep.subr.mxu0 0.0
    %475 = vmatpush1.xpose.msra.mxu0 0.0
    %476 = vmatprep.subr.mxu0 0.0
    %477 = vmatpush1.xpose.msra.mxu0 0.0
    %478 = vmatprep.subr.mxu0 0.0
    %479 = vmatpush1.xpose.msra.mxu0 0.0
    %480 = vmatprep.subr.mxu0 0.0
    %481 = vmatpush1.xpose.msra.mxu0 0.0
    %482 = vmatprep.subr.mxu0 0.0
    %483 = vmatpush1.xpose.msra.mxu0 0.0
    %484 = vmatprep.subr.mxu0 0.0
    %485 = vmatpush1.xpose.msra.mxu0 0.0
    %486 = vmatprep.subr.mxu0 0.0
    %487 = vmatpush1.xpose.msra.mxu0 0.0
    %488 = vmatprep.subr.mxu0 0.0
    %489 = vmatpush1.xpose.msra.mxu0 0.0
    %490 = vmatprep.subr.mxu0 0.0
    %491 = vmatpush1.xpose.msra.mxu0 0.0
    %492 = vmatprep.subr.mxu0 0.0
    %493 = vmatpush1.xpose.msra.mxu0 0.0
    %494 = vmatprep.subr.mxu0 0.0
    %495 = vmatpush1.xpose.msra.mxu0 0.0
    %496 = vmatprep.subr.mxu0 0.0
    %497 = vmatpush1.xpose.msra.mxu0 0.0
    %498 = vmatprep.subr.mxu0 0.0
    %499 = vmatpush1.xpose.msra.mxu0 0.0
    %500 = vmatprep.subr.mxu0 0.0
    %501 = vmatpush1.xpose.msra.mxu0 0.0
    %502 = vmatprep.mubr.f32.mxu0 0.0
    %503 = vmatmul.mubr.f32.gmra.mrb[0].mxu0 %v434
    %v504 = vpop.f32.mrb[0].mxu0
    %v505 = vadd.f32 0.0, %v504
    %v506 = vpop.f32.mrb[0].mxu0
    %507 = vdwg.mxu0
    %509 = vrot.lane.b32.xlu0 %v220, 96
    %v510 = vpop.permute.xlu0 %509
    %v511 = vsel %vm279, %v220, 0
    %v513 = vsel %vm279, %v510, 0
    %515 = vmatprep.subr.mxu0 0.0
    %516 = vmatpush1.xpose.msra.mxu0 %v513
    %517 = vmatprep.subr.mxu0 0.0
    %518 = vmatpush1.xpose.msra.mxu0 0.0
    %519 = vmatprep.subr.mxu0 0.0
    %520 = vmatpush1.xpose.msra.mxu0 0.0
    %521 = vmatprep.subr.mxu0 0.0
    %522 = vmatpush1.xpose.msra.mxu0 0.0
    %523 = vmatprep.subr.mxu0 0.0
    %524 = vmatpush1.xpose.msra.mxu0 0.0
    %525 = vmatprep.subr.mxu0 0.0
    %526 = vmatpush1.xpose.msra.mxu0 0.0
    %527 = vmatprep.subr.mxu0 0.0
    %528 = vmatpush1.xpose.msra.mxu0 0.0
    %529 = vmatprep.subr.mxu0 0.0
    %530 = vmatpush1.xpose.msra.mxu0 0.0
    %531 = vmatprep.subr.mxu0 0.0
    %532 = vmatpush1.xpose.msra.mxu0 0.0
    %533 = vmatprep.subr.mxu0 0.0
    %534 = vmatpush1.xpose.msra.mxu0 0.0
    %535 = vmatprep.subr.mxu0 0.0
    %536 = vmatpush1.xpose.msra.mxu0 0.0
    %537 = vmatprep.subr.mxu0 0.0
    %538 = vmatpush1.xpose.msra.mxu0 0.0
    %539 = vmatprep.subr.mxu0 0.0
    %540 = vmatpush1.xpose.msra.mxu0 0.0
    %541 = vmatprep.subr.mxu0 0.0
    %542 = vmatpush1.xpose.msra.mxu0 0.0
    %543 = vmatprep.subr.mxu0 0.0
    %544 = vmatpush1.xpose.msra.mxu0 0.0
    %545 = vmatprep.subr.mxu0 0.0
    %546 = vmatpush1.xpose.msra.mxu0 0.0
    %547 = vmatprep.subr.mxu0 0.0
    %548 = vmatpush1.xpose.msra.mxu0 0.0
    %549 = vmatprep.subr.mxu0 0.0
    %550 = vmatpush1.xpose.msra.mxu0 0.0
    %551 = vmatprep.subr.mxu0 0.0
    %552 = vmatpush1.xpose.msra.mxu0 0.0
    %553 = vmatprep.subr.mxu0 0.0
    %554 = vmatpush1.xpose.msra.mxu0 0.0
    %555 = vmatprep.subr.mxu0 0.0
    %556 = vmatpush1.xpose.msra.mxu0 0.0
    %557 = vmatprep.subr.mxu0 0.0
    %558 = vmatpush1.xpose.msra.mxu0 0.0
    %559 = vmatprep.subr.mxu0 0.0
    %560 = vmatpush1.xpose.msra.mxu0 0.0
    %561 = vmatprep.subr.mxu0 0.0
    %562 = vmatpush1.xpose.msra.mxu0 0.0
    %563 = vmatprep.subr.mxu0 0.0
    %564 = vmatpush1.xpose.msra.mxu0 0.0
    %565 = vmatprep.subr.mxu0 0.0
    %566 = vmatpush1.xpose.msra.mxu0 0.0
    %567 = vmatprep.subr.mxu0 0.0
    %568 = vmatpush1.xpose.msra.mxu0 0.0
    %569 = vmatprep.subr.mxu0 0.0
    %570 = vmatpush1.xpose.msra.mxu0 0.0
    %571 = vmatprep.subr.mxu0 0.0
    %572 = vmatpush1.xpose.msra.mxu0 0.0
    %573 = vmatprep.subr.mxu0 0.0
    %574 = vmatpush1.xpose.msra.mxu0 0.0
    %575 = vmatprep.subr.mxu0 0.0
    %576 = vmatpush1.xpose.msra.mxu0 0.0
    %577 = vmatprep.subr.mxu0 0.0
    %578 = vmatpush1.xpose.msra.mxu0 0.0
    %579 = vmatprep.mubr.f32.mxu0 0.0
    %580 = vmatmul.mubr.f32.gmra.mrb[0].mxu0 %v511
    %v581 = vpop.f32.mrb[0].mxu0
    %v582 = vadd.f32 0.0, %v581
    %v583 = vpop.f32.mrb[0].mxu0
    %584 = vdwg.mxu0
    %586 = vrot.lane.b32.xlu0 %v236, 96
    %v587 = vpop.permute.xlu0 %586
    %v588 = vsel %vm279, %v236, 0
    %v590 = vsel %vm279, %v587, 0
    %592 = vmatprep.subr.mxu0 0.0
    %593 = vmatpush1.xpose.msra.mxu0 %v590
    %594 = vmatprep.subr.mxu0 0.0
    %595 = vmatpush1.xpose.msra.mxu0 0.0
    %596 = vmatprep.subr.mxu0 0.0
    %597 = vmatpush1.xpose.msra.mxu0 0.0
    %598 = vmatprep.subr.mxu0 0.0
    %599 = vmatpush1.xpose.msra.mxu0 0.0
    %600 = vmatprep.subr.mxu0 0.0
    %601 = vmatpush1.xpose.msra.mxu0 0.0
    %602 = vmatprep.subr.mxu0 0.0
    %603 = vmatpush1.xpose.msra.mxu0 0.0
    %604 = vmatprep.subr.mxu0 0.0
    %605 = vmatpush1.xpose.msra.mxu0 0.0
    %606 = vmatprep.subr.mxu0 0.0
    %607 = vmatpush1.xpose.msra.mxu0 0.0
    %608 = vmatprep.subr.mxu0 0.0
    %609 = vmatpush1.xpose.msra.mxu0 0.0
    %610 = vmatprep.subr.mxu0 0.0
    %611 = vmatpush1.xpose.msra.mxu0 0.0
    %612 = vmatprep.subr.mxu0 0.0
    %613 = vmatpush1.xpose.msra.mxu0 0.0
    %614 = vmatprep.subr.mxu0 0.0
    %615 = vmatpush1.xpose.msra.mxu0 0.0
    %616 = vmatprep.subr.mxu0 0.0
    %617 = vmatpush1.xpose.msra.mxu0 0.0
    %618 = vmatprep.subr.mxu0 0.0
    %619 = vmatpush1.xpose.msra.mxu0 0.0
    %620 = vmatprep.subr.mxu0 0.0
    %621 = vmatpush1.xpose.msra.mxu0 0.0
    %622 = vmatprep.subr.mxu0 0.0
    %623 = vmatpush1.xpose.msra.mxu0 0.0
    %624 = vmatprep.subr.mxu0 0.0
    %625 = vmatpush1.xpose.msra.mxu0 0.0
    %626 = vmatprep.subr.mxu0 0.0
    %627 = vmatpush1.xpose.msra.mxu0 0.0
    %628 = vmatprep.subr.mxu0 0.0
    %629 = vmatpush1.xpose.msra.mxu0 0.0
    %630 = vmatprep.subr.mxu0 0.0
    %631 = vmatpush1.xpose.msra.mxu0 0.0
    %632 = vmatprep.subr.mxu0 0.0
    %633 = vmatpush1.xpose.msra.mxu0 0.0
    %634 = vmatprep.subr.mxu0 0.0
    %635 = vmatpush1.xpose.msra.mxu0 0.0
    %636 = vmatprep.subr.mxu0 0.0
    %637 = vmatpush1.xpose.msra.mxu0 0.0
    %638 = vmatprep.subr.mxu0 0.0
    %639 = vmatpush1.xpose.msra.mxu0 0.0
    %640 = vmatprep.subr.mxu0 0.0
    %641 = vmatpush1.xpose.msra.mxu0 0.0
    %642 = vmatprep.subr.mxu0 0.0
    %643 = vmatpush1.xpose.msra.mxu0 0.0
    %644 = vmatprep.subr.mxu0 0.0
    %645 = vmatpush1.xpose.msra.mxu0 0.0
    %646 = vmatprep.subr.mxu0 0.0
    %647 = vmatpush1.xpose.msra.mxu0 0.0
    %648 = vmatprep.subr.mxu0 0.0
    %649 = vmatpush1.xpose.msra.mxu0 0.0
    %650 = vmatprep.subr.mxu0 0.0
    %651 = vmatpush1.xpose.msra.mxu0 0.0
    %652 = vmatprep.subr.mxu0 0.0
    %653 = vmatpush1.xpose.msra.mxu0 0.0
    %654 = vmatprep.subr.mxu0 0.0
    %655 = vmatpush1.xpose.msra.mxu0 0.0
    %656 = vmatprep.mubr.f32.mxu0 0.0
    %657 = vmatmul.mubr.f32.gmra.mrb[0].mxu0 %v588
    %v658 = vpop.f32.mrb[0].mxu0
    %v659 = vadd.f32 0.0, %v658
    %v660 = vpop.f32.mrb[0].mxu0
    %661 = vdwg.mxu0
    %663 = vrot.lane.b32.xlu0 %v249, 96
    %v664 = vpop.permute.xlu0 %663
    %v665 = vsel %vm279, %v249, 0
    %v667 = vsel %vm279, %v664, 0
    %669 = vmatprep.subr.mxu0 0.0
    %670 = vmatpush1.xpose.msra.mxu0 %v667
    %671 = vmatprep.subr.mxu0 0.0
    %672 = vmatpush1.xpose.msra.mxu0 0.0
    %673 = vmatprep.subr.mxu0 0.0
    %674 = vmatpush1.xpose.msra.mxu0 0.0
    %675 = vmatprep.subr.mxu0 0.0
    %676 = vmatpush1.xpose.msra.mxu0 0.0
    %677 = vmatprep.subr.mxu0 0.0
    %678 = vmatpush1.xpose.msra.mxu0 0.0
    %679 = vmatprep.subr.mxu0 0.0
    %680 = vmatpush1.xpose.msra.mxu0 0.0
    %681 = vmatprep.subr.mxu0 0.0
    %682 = vmatpush1.xpose.msra.mxu0 0.0
    %683 = vmatprep.subr.mxu0 0.0
    %684 = vmatpush1.xpose.msra.mxu0 0.0
    %685 = vmatprep.subr.mxu0 0.0
    %686 = vmatpush1.xpose.msra.mxu0 0.0
    %687 = vmatprep.subr.mxu0 0.0
    %688 = vmatpush1.xpose.msra.mxu0 0.0
    %689 = vmatprep.subr.mxu0 0.0
    %690 = vmatpush1.xpose.msra.mxu0 0.0
    %691 = vmatprep.subr.mxu0 0.0
    %692 = vmatpush1.xpose.msra.mxu0 0.0
    %693 = vmatprep.subr.mxu0 0.0
    %694 = vmatpush1.xpose.msra.mxu0 0.0
    %695 = vmatprep.subr.mxu0 0.0
    %696 = vmatpush1.xpose.msra.mxu0 0.0
    %697 = vmatprep.subr.mxu0 0.0
    %698 = vmatpush1.xpose.msra.mxu0 0.0
    %699 = vmatprep.subr.mxu0 0.0
    %700 = vmatpush1.xpose.msra.mxu0 0.0
    %701 = vmatprep.subr.mxu0 0.0
    %702 = vmatpush1.xpose.msra.mxu0 0.0
    %703 = vmatprep.subr.mxu0 0.0
    %704 = vmatpush1.xpose.msra.mxu0 0.0
    %705 = vmatprep.subr.mxu0 0.0
    %706 = vmatpush1.xpose.msra.mxu0 0.0
    %707 = vmatprep.subr.mxu0 0.0
    %708 = vmatpush1.xpose.msra.mxu0 0.0
    %709 = vmatprep.subr.mxu0 0.0
    %710 = vmatpush1.xpose.msra.mxu0 0.0
    %711 = vmatprep.subr.mxu0 0.0
    %712 = vmatpush1.xpose.msra.mxu0 0.0
    %713 = vmatprep.subr.mxu0 0.0
    %714 = vmatpush1.xpose.msra.mxu0 0.0
    %715 = vmatprep.subr.mxu0 0.0
    %716 = vmatpush1.xpose.msra.mxu0 0.0
    %717 = vmatprep.subr.mxu0 0.0
    %718 = vmatpush1.xpose.msra.mxu0 0.0
    %719 = vmatprep.subr.mxu0 0.0
    %720 = vmatpush1.xpose.msra.mxu0 0.0
    %721 = vmatprep.subr.mxu0 0.0
    %722 = vmatpush1.xpose.msra.mxu0 0.0
    %723 = vmatprep.subr.mxu0 0.0
    %724 = vmatpush1.xpose.msra.mxu0 0.0
    %725 = vmatprep.subr.mxu0 0.0
    %726 = vmatpush1.xpose.msra.mxu0 0.0
    %727 = vmatprep.subr.mxu0 0.0
    %728 = vmatpush1.xpose.msra.mxu0 0.0
    %729 = vmatprep.subr.mxu0 0.0
    %730 = vmatpush1.xpose.msra.mxu0 0.0
    %731 = vmatprep.subr.mxu0 0.0
    %732 = vmatpush1.xpose.msra.mxu0 0.0
    %733 = vmatprep.mubr.f32.mxu0 0.0
    %734 = vmatmul.mubr.f32.gmra.mrb[0].mxu0 %v665
    %v735 = vpop.f32.mrb[0].mxu0
    %v736 = vadd.f32 0.0, %v735
    %v737 = vpop.f32.mrb[0].mxu0
    %738 = vdwg.mxu0
    %740 = vrot.lane.b32.xlu0 %v262, 96
    %v741 = vpop.permute.xlu0 %740
    %v742 = vsel %vm279, %v262, 0
    %v744 = vsel %vm279, %v741, 0
    %746 = vmatprep.subr.mxu0 0.0
    %747 = vmatpush1.xpose.msra.mxu0 %v744
    %748 = vmatprep.subr.mxu0 0.0
    %749 = vmatpush1.xpose.msra.mxu0 0.0
    %750 = vmatprep.subr.mxu0 0.0
    %751 = vmatpush1.xpose.msra.mxu0 0.0
    %752 = vmatprep.subr.mxu0 0.0
    %753 = vmatpush1.xpose.msra.mxu0 0.0
    %754 = vmatprep.subr.mxu0 0.0
    %755 = vmatpush1.xpose.msra.mxu0 0.0
    %756 = vmatprep.subr.mxu0 0.0
    %757 = vmatpush1.xpose.msra.mxu0 0.0
    %758 = vmatprep.subr.mxu0 0.0
    %759 = vmatpush1.xpose.msra.mxu0 0.0
    %760 = vmatprep.subr.mxu0 0.0
    %761 = vmatpush1.xpose.msra.mxu0 0.0
    %762 = vmatprep.subr.mxu0 0.0
    %763 = vmatpush1.xpose.msra.mxu0 0.0
    %764 = vmatprep.subr.mxu0 0.0
    %765 = vmatpush1.xpose.msra.mxu0 0.0
    %766 = vmatprep.subr.mxu0 0.0
    %767 = vmatpush1.xpose.msra.mxu0 0.0
    %768 = vmatprep.subr.mxu0 0.0
    %769 = vmatpush1.xpose.msra.mxu0 0.0
    %770 = vmatprep.subr.mxu0 0.0
    %771 = vmatpush1.xpose.msra.mxu0 0.0
    %772 = vmatprep.subr.mxu0 0.0
    %773 = vmatpush1.xpose.msra.mxu0 0.0
    %774 = vmatprep.subr.mxu0 0.0
    %775 = vmatpush1.xpose.msra.mxu0 0.0
    %776 = vmatprep.subr.mxu0 0.0
    %777 = vmatpush1.xpose.msra.mxu0 0.0
    %778 = vmatprep.subr.mxu0 0.0
    %779 = vmatpush1.xpose.msra.mxu0 0.0
    %780 = vmatprep.subr.mxu0 0.0
    %781 = vmatpush1.xpose.msra.mxu0 0.0
    %782 = vmatprep.subr.mxu0 0.0
    %783 = vmatpush1.xpose.msra.mxu0 0.0
    %784 = vmatprep.subr.mxu0 0.0
    %785 = vmatpush1.xpose.msra.mxu0 0.0
    %786 = vmatprep.subr.mxu0 0.0
    %787 = vmatpush1.xpose.msra.mxu0 0.0
    %788 = vmatprep.subr.mxu0 0.0
    %789 = vmatpush1.xpose.msra.mxu0 0.0
    %790 = vmatprep.subr.mxu0 0.0
    %791 = vmatpush1.xpose.msra.mxu0 0.0
    %792 = vmatprep.subr.mxu0 0.0
    %793 = vmatpush1.xpose.msra.mxu0 0.0
    %794 = vmatprep.subr.mxu0 0.0
    %795 = vmatpush1.xpose.msra.mxu0 0.0
    %796 = vmatprep.subr.mxu0 0.0
    %797 = vmatpush1.xpose.msra.mxu0 0.0
    %798 = vmatprep.subr.mxu0 0.0
    %799 = vmatpush1.xpose.msra.mxu0 0.0
    %800 = vmatprep.subr.mxu0 0.0
    %801 = vmatpush1.xpose.msra.mxu0 0.0
    %802 = vmatprep.subr.mxu0 0.0
    %803 = vmatpush1.xpose.msra.mxu0 0.0
    %804 = vmatprep.subr.mxu0 0.0
    %805 = vmatpush1.xpose.msra.mxu0 0.0
    %806 = vmatprep.subr.mxu0 0.0
    %807 = vmatpush1.xpose.msra.mxu0 0.0
    %808 = vmatprep.subr.mxu0 0.0
    %809 = vmatpush1.xpose.msra.mxu0 0.0
    %810 = vmatprep.mubr.f32.mxu0 0.0
    %811 = vmatmul.mubr.f32.gmra.mrb[0].mxu0 %v742
    %v812 = vpop.f32.mrb[0].mxu0
    %v813 = vadd.f32 0.0, %v812
    %v814 = vpop.f32.mrb[0].mxu0
    %815 = vdwg.mxu0
    %817 = vrot.lane.b32.xlu0 %v275, 96
    %v818 = vpop.permute.xlu0 %817
    %v819 = vsel %vm279, %v275, 0
    %v821 = vsel %vm279, %v818, 0
    %823 = vmatprep.subr.mxu0 0.0
    %824 = vmatpush1.xpose.msra.mxu0 %v821
    %825 = vmatprep.subr.mxu0 0.0
    %826 = vmatpush1.xpose.msra.mxu0 0.0
    %827 = vmatprep.subr.mxu0 0.0
    %828 = vmatpush1.xpose.msra.mxu0 0.0
    %829 = vmatprep.subr.mxu0 0.0
    %830 = vmatpush1.xpose.msra.mxu0 0.0
    %831 = vmatprep.subr.mxu0 0.0
    %832 = vmatpush1.xpose.msra.mxu0 0.0
    %833 = vmatprep.subr.mxu0 0.0
    %834 = vmatpush1.xpose.msra.mxu0 0.0
    %835 = vmatprep.subr.mxu0 0.0
    %836 = vmatpush1.xpose.msra.mxu0 0.0
    %837 = vmatprep.subr.mxu0 0.0
    %838 = vmatpush1.xpose.msra.mxu0 0.0
    %839 = vmatprep.subr.mxu0 0.0
    %840 = vmatpush1.xpose.msra.mxu0 0.0
    %841 = vmatprep.subr.mxu0 0.0
    %842 = vmatpush1.xpose.msra.mxu0 0.0
    %843 = vmatprep.subr.mxu0 0.0
    %844 = vmatpush1.xpose.msra.mxu0 0.0
    %845 = vmatprep.subr.mxu0 0.0
    %846 = vmatpush1.xpose.msra.mxu0 0.0
    %847 = vmatprep.subr.mxu0 0.0
    %848 = vmatpush1.xpose.msra.mxu0 0.0
    %849 = vmatprep.subr.mxu0 0.0
    %850 = vmatpush1.xpose.msra.mxu0 0.0
    %851 = vmatprep.subr.mxu0 0.0
    %852 = vmatpush1.xpose.msra.mxu0 0.0
    %853 = vmatprep.subr.mxu0 0.0
    %854 = vmatpush1.xpose.msra.mxu0 0.0
    %855 = vmatprep.subr.mxu0 0.0
    %856 = vmatpush1.xpose.msra.mxu0 0.0
    %857 = vmatprep.subr.mxu0 0.0
    %858 = vmatpush1.xpose.msra.mxu0 0.0
    %859 = vmatprep.subr.mxu0 0.0
    %860 = vmatpush1.xpose.msra.mxu0 0.0
    %861 = vmatprep.subr.mxu0 0.0
    %862 = vmatpush1.xpose.msra.mxu0 0.0
    %863 = vmatprep.subr.mxu0 0.0
    %864 = vmatpush1.xpose.msra.mxu0 0.0
    %865 = vmatprep.subr.mxu0 0.0
    %866 = vmatpush1.xpose.msra.mxu0 0.0
    %867 = vmatprep.subr.mxu0 0.0
    %868 = vmatpush1.xpose.msra.mxu0 0.0
    %869 = vmatprep.subr.mxu0 0.0
    %870 = vmatpush1.xpose.msra.mxu0 0.0
    %871 = vmatprep.subr.mxu0 0.0
    %872 = vmatpush1.xpose.msra.mxu0 0.0
    %873 = vmatprep.subr.mxu0 0.0
    %874 = vmatpush1.xpose.msra.mxu0 0.0
    %875 = vmatprep.subr.mxu0 0.0
    %876 = vmatpush1.xpose.msra.mxu0 0.0
    %877 = vmatprep.subr.mxu0 0.0
    %878 = vmatpush1.xpose.msra.mxu0 0.0
    %879 = vmatprep.subr.mxu0 0.0
    %880 = vmatpush1.xpose.msra.mxu0 0.0
    %881 = vmatprep.subr.mxu0 0.0
    %882 = vmatpush1.xpose.msra.mxu0 0.0
    %883 = vmatprep.subr.mxu0 0.0
    %884 = vmatpush1.xpose.msra.mxu0 0.0
    %885 = vmatprep.subr.mxu0 0.0
    %886 = vmatpush1.xpose.msra.mxu0 0.0
    %887 = vmatprep.mubr.f32.mxu0 0.0
    %888 = vmatmul.mubr.f32.gmra.mrb[0].mxu0 %v819
    %v889 = vpop.f32.mrb[0].mxu0
    %v890 = vadd.f32 0.0, %v889
    %v891 = vpop.f32.mrb[0].mxu0
    %892 = vdwg.mxu0
    %v893 = vsel %vm279, %v351, -inf
    %894 = vmax.xlane.f32.xlu0 %v893
    %v895 = vpop.xlane.xlu0 %894
    %v896 = vsel %vm279, %v428, -inf
    %897 = vmax.xlane.f32.xlu0 %v896
    %v898 = vpop.xlane.xlu0 %897
    %v899 = vsel %vm279, %v505, -inf
    %900 = vmax.xlane.f32.xlu0 %v899
    %v901 = vpop.xlane.xlu0 %900
    %v902 = vsel %vm279, %v582, -inf
    %903 = vmax.xlane.f32.xlu0 %v902
    %v904 = vpop.xlane.xlu0 %903
    %v905 = vsel %vm279, %v659, -inf
    %906 = vmax.xlane.f32.xlu0 %v905
    %v907 = vpop.xlane.xlu0 %906
    %v908 = vsel %vm279, %v736, -inf
    %909 = vmax.xlane.f32.xlu0 %v908
    %v910 = vpop.xlane.xlu0 %909
    %v911 = vsel %vm279, %v813, -inf
    %912 = vmax.xlane.f32.xlu0 %v911
    %v913 = vpop.xlane.xlu0 %912
    %v914 = vsel %vm279, %v890, -inf
    %915 = vmax.xlane.f32.xlu0 %v914
    %v916 = vpop.xlane.xlu0 %915
    %v917 = vsub.f32 %v351, %v895
    %v918 = vsub.f32 %v428, %v898
    %v919 = vsub.f32 %v505, %v901
    %v920 = vsub.f32 %v582, %v904
    %v921 = vsub.f32 %v659, %v907
    %v922 = vsub.f32 %v736, %v910
    %v923 = vsub.f32 %v813, %v913
    %v924 = vsub.f32 %v890, %v916
    %v925 = vmul.f32 %v917, 1.442695
    %v926 = vpow.pop %v925
    %v927 = vmul.f32 %v918, 1.442695
    %v928 = vpow.pop %v927
    %v929 = vmul.f32 %v919, 1.442695
    %v930 = vpow.pop %v929
    %v931 = vmul.f32 %v920, 1.442695
    %v932 = vpow.pop %v931
    %v933 = vmul.f32 %v921, 1.442695
    %v934 = vpow.pop %v933
    %v935 = vmul.f32 %v922, 1.442695
    %v936 = vpow.pop %v935
    %v937 = vmul.f32 %v923, 1.442695
    %v938 = vpow.pop %v937
    %v939 = vmul.f32 %v924, 1.442695
    %v940 = vpow.pop %v939
    %v941 = vsel %vm279, %v926, 0.0
    %942 = vadd.xlane.f32.xlu0 %v941
    %v943 = vpop.xlane.xlu0 %942
    %v944 = vsel %vm279, %v928, 0.0
    %945 = vadd.xlane.f32.xlu0 %v944
    %v946 = vpop.xlane.xlu0 %945
    %v947 = vsel %vm279, %v930, 0.0
    %948 = vadd.xlane.f32.xlu0 %v947
    %v949 = vpop.xlane.xlu0 %948
    %v950 = vsel %vm279, %v932, 0.0
    %951 = vadd.xlane.f32.xlu0 %v950
    %v952 = vpop.xlane.xlu0 %951
    %v953 = vsel %vm279, %v934, 0.0
    %954 = vadd.xlane.f32.xlu0 %v953
    %v955 = vpop.xlane.xlu0 %954
    %v956 = vsel %vm279, %v936, 0.0
    %957 = vadd.xlane.f32.xlu0 %v956
    %v958 = vpop.xlane.xlu0 %957
    %v959 = vsel %vm279, %v938, 0.0
    %960 = vadd.xlane.f32.xlu0 %v959
    %v961 = vpop.xlane.xlu0 %960
    %v962 = vsel %vm279, %v940, 0.0
    %963 = vadd.xlane.f32.xlu0 %v962
    %v964 = vpop.xlane.xlu0 %963
    %v965 = vrcp.pop %v943
    %v966 = vrcp.pop %v946
    %v967 = vrcp.pop %v949
    %v968 = vrcp.pop %v952
    %v969 = vrcp.pop %v955
    %v970 = vrcp.pop %v958
    %v971 = vrcp.pop %v961
    %v972 = vrcp.pop %v964
    %v973 = vmul.f32 %v926, %v965
    %v974 = vmul.f32 %v928, %v966
    %v975 = vmul.f32 %v930, %v967
    %v976 = vmul.f32 %v932, %v968
    %v977 = vmul.f32 %v934, %v969
    %v978 = vmul.f32 %v936, %v970
    %v979 = vmul.f32 %v938, %v971
    %v980 = vmul.f32 %v940, %v972
    %981 = vrot.lane.b32.xlu0 %v181, 64
    %v982 = vpop.permute.xlu0 %981
    %v985 = vsel %vm279, %v973, 0
    %987 = vmatprep.subr.mxu0 0.0
    %988 = vmatpush1.msra.mxu0 %v982
    %989 = vmatprep.subr.mxu0 0.0
    %990 = vmatpush1.msra.mxu0 0.0
    %991 = vmatprep.subr.mxu0 0.0
    %992 = vmatpush1.msra.mxu0 0.0
    %993 = vmatprep.subr.mxu0 0.0
    %994 = vmatpush1.msra.mxu0 0.0
    %995 = vmatprep.subr.mxu0 0.0
    %996 = vmatpush1.msra.mxu0 0.0
    %997 = vmatprep.subr.mxu0 0.0
    %998 = vmatpush1.msra.mxu0 0.0
    %999 = vmatprep.subr.mxu0 0.0
    %1000 = vmatpush1.msra.mxu0 0.0
    %1001 = vmatprep.subr.mxu0 0.0
    %1002 = vmatpush1.msra.mxu0 0.0
    %1003 = vmatprep.subr.mxu0 0.0
    %1004 = vmatpush1.msra.mxu0 0.0
    %1005 = vmatprep.subr.mxu0 0.0
    %1006 = vmatpush1.msra.mxu0 0.0
    %1007 = vmatprep.subr.mxu0 0.0
    %1008 = vmatpush1.msra.mxu0 0.0
    %1009 = vmatprep.subr.mxu0 0.0
    %1010 = vmatpush1.msra.mxu0 0.0
    %1011 = vmatprep.subr.mxu0 0.0
    %1012 = vmatpush1.msra.mxu0 0.0
    %1013 = vmatprep.subr.mxu0 0.0
    %1014 = vmatpush1.msra.mxu0 0.0
    %1015 = vmatprep.subr.mxu0 0.0
    %1016 = vmatpush1.msra.mxu0 0.0
    %1017 = vmatprep.subr.mxu0 0.0
    %1018 = vmatpush1.msra.mxu0 0.0
    %1019 = vmatprep.subr.mxu0 0.0
    %1020 = vmatpush1.msra.mxu0 0.0
    %1021 = vmatprep.subr.mxu0 0.0
    %1022 = vmatpush1.msra.mxu0 0.0
    %1023 = vmatprep.subr.mxu0 0.0
    %1024 = vmatpush1.msra.mxu0 0.0
    %1025 = vmatprep.subr.mxu0 0.0
    %1026 = vmatpush1.msra.mxu0 0.0
    %1027 = vmatprep.subr.mxu0 0.0
    %1028 = vmatpush1.msra.mxu0 0.0
    %1029 = vmatprep.subr.mxu0 0.0
    %1030 = vmatpush1.msra.mxu0 0.0
    %1031 = vmatprep.subr.mxu0 0.0
    %1032 = vmatpush1.msra.mxu0 0.0
    %1033 = vmatprep.subr.mxu0 0.0
    %1034 = vmatpush1.msra.mxu0 0.0
    %1035 = vmatprep.subr.mxu0 0.0
    %1036 = vmatpush1.msra.mxu0 0.0
    %1037 = vmatprep.subr.mxu0 0.0
    %1038 = vmatpush1.msra.mxu0 0.0
    %1039 = vmatprep.subr.mxu0 0.0
    %1040 = vmatpush1.msra.mxu0 0.0
    %1041 = vmatprep.subr.mxu0 0.0
    %1042 = vmatpush1.msra.mxu0 0.0
    %1043 = vmatprep.subr.mxu0 0.0
    %1044 = vmatpush1.msra.mxu0 0.0
    %1045 = vmatprep.subr.mxu0 0.0
    %1046 = vmatpush1.msra.mxu0 0.0
    %1047 = vmatprep.subr.mxu0 0.0
    %1048 = vmatpush1.msra.mxu0 0.0
    %1049 = vmatprep.subr.mxu0 0.0
    %1050 = vmatpush1.msra.mxu0 0.0
    %1051 = vmatprep.mubr.f32.mxu0 0.0
    %1052 = vmatmul.mubr.f32.gmra.mrb[0].mxu0 %v985
    %v1053 = vpop.f32.mrb[0].mxu0
    %v1054 = vadd.f32 0.0, %v1053
    %v1055 = vpop.f32.mrb[0].mxu0
    %1056 = vdwg.mxu0
    %1057 = vrot.lane.b32.xlu0 %v194, 64
    %v1058 = vpop.permute.xlu0 %1057
    %v1061 = vsel %vm279, %v974, 0
    %1063 = vmatprep.subr.mxu0 0.0
    %1064 = vmatpush1.msra.mxu0 %v1058
    %1065 = vmatprep.subr.mxu0 0.0
    %1066 = vmatpush1.msra.mxu0 0.0
    %1067 = vmatprep.subr.mxu0 0.0
    %1068 = vmatpush1.msra.mxu0 0.0
    %1069 = vmatprep.subr.mxu0 0.0
    %1070 = vmatpush1.msra.mxu0 0.0
    %1071 = vmatprep.subr.mxu0 0.0
    %1072 = vmatpush1.msra.mxu0 0.0
    %1073 = vmatprep.subr.mxu0 0.0
    %1074 = vmatpush1.msra.mxu0 0.0
    %1075 = vmatprep.subr.mxu0 0.0
    %1076 = vmatpush1.msra.mxu0 0.0
    %1077 = vmatprep.subr.mxu0 0.0
    %1078 = vmatpush1.msra.mxu0 0.0
    %1079 = vmatprep.subr.mxu0 0.0
    %1080 = vmatpush1.msra.mxu0 0.0
    %1081 = vmatprep.subr.mxu0 0.0
    %1082 = vmatpush1.msra.mxu0 0.0
    %1083 = vmatprep.subr.mxu0 0.0
    %1084 = vmatpush1.msra.mxu0 0.0
    %1085 = vmatprep.subr.mxu0 0.0
    %1086 = vmatpush1.msra.mxu0 0.0
    %1087 = vmatprep.subr.mxu0 0.0
    %1088 = vmatpush1.msra.mxu0 0.0
    %1089 = vmatprep.subr.mxu0 0.0
    %1090 = vmatpush1.msra.mxu0 0.0
    %1091 = vmatprep.subr.mxu0 0.0
    %1092 = vmatpush1.msra.mxu0 0.0
    %1093 = vmatprep.subr.mxu0 0.0
    %1094 = vmatpush1.msra.mxu0 0.0
    %1095 = vmatprep.subr.mxu0 0.0
    %1096 = vmatpush1.msra.mxu0 0.0
    %1097 = vmatprep.subr.mxu0 0.0
    %1098 = vmatpush1.msra.mxu0 0.0
    %1099 = vmatprep.subr.mxu0 0.0
    %1100 = vmatpush1.msra.mxu0 0.0
    %1101 = vmatprep.subr.mxu0 0.0
    %1102 = vmatpush1.msra.mxu0 0.0
    %1103 = vmatprep.subr.mxu0 0.0
    %1104 = vmatpush1.msra.mxu0 0.0
    %1105 = vmatprep.subr.mxu0 0.0
    %1106 = vmatpush1.msra.mxu0 0.0
    %1107 = vmatprep.subr.mxu0 0.0
    %1108 = vmatpush1.msra.mxu0 0.0
    %1109 = vmatprep.subr.mxu0 0.0
    %1110 = vmatpush1.msra.mxu0 0.0
    %1111 = vmatprep.subr.mxu0 0.0
    %1112 = vmatpush1.msra.mxu0 0.0
    %1113 = vmatprep.subr.mxu0 0.0
    %1114 = vmatpush1.msra.mxu0 0.0
    %1115 = vmatprep.subr.mxu0 0.0
    %1116 = vmatpush1.msra.mxu0 0.0
    %1117 = vmatprep.subr.mxu0 0.0
    %1118 = vmatpush1.msra.mxu0 0.0
    %1119 = vmatprep.subr.mxu0 0.0
    %1120 = vmatpush1.msra.mxu0 0.0
    %1121 = vmatprep.subr.mxu0 0.0
    %1122 = vmatpush1.msra.mxu0 0.0
    %1123 = vmatprep.subr.mxu0 0.0
    %1124 = vmatpush1.msra.mxu0 0.0
    %1125 = vmatprep.subr.mxu0 0.0
    %1126 = vmatpush1.msra.mxu0 0.0
    %1127 = vmatprep.mubr.f32.mxu0 0.0
    %1128 = vmatmul.mubr.f32.gmra.mrb[0].mxu0 %v1061
    %v1129 = vpop.f32.mrb[0].mxu0
    %v1130 = vadd.f32 0.0, %v1129
    %v1131 = vpop.f32.mrb[0].mxu0
    %1132 = vdwg.mxu0
    %1133 = vrot.lane.b32.xlu0 %v207, 64
    %v1134 = vpop.permute.xlu0 %1133
    %v1137 = vsel %vm279, %v975, 0
    %1139 = vmatprep.subr.mxu0 0.0
    %1140 = vmatpush1.msra.mxu0 %v1134
    %1141 = vmatprep.subr.mxu0 0.0
    %1142 = vmatpush1.msra.mxu0 0.0
    %1143 = vmatprep.subr.mxu0 0.0
    %1144 = vmatpush1.msra.mxu0 0.0
    %1145 = vmatprep.subr.mxu0 0.0
    %1146 = vmatpush1.msra.mxu0 0.0
    %1147 = vmatprep.subr.mxu0 0.0
    %1148 = vmatpush1.msra.mxu0 0.0
    %1149 = vmatprep.subr.mxu0 0.0
    %1150 = vmatpush1.msra.mxu0 0.0
    %1151 = vmatprep.subr.mxu0 0.0
    %1152 = vmatpush1.msra.mxu0 0.0
    %1153 = vmatprep.subr.mxu0 0.0
    %1154 = vmatpush1.msra.mxu0 0.0
    %1155 = vmatprep.subr.mxu0 0.0
    %1156 = vmatpush1.msra.mxu0 0.0
    %1157 = vmatprep.subr.mxu0 0.0
    %1158 = vmatpush1.msra.mxu0 0.0
    %1159 = vmatprep.subr.mxu0 0.0
    %1160 = vmatpush1.msra.mxu0 0.0
    %1161 = vmatprep.subr.mxu0 0.0
    %1162 = vmatpush1.msra.mxu0 0.0
    %1163 = vmatprep.subr.mxu0 0.0
    %1164 = vmatpush1.msra.mxu0 0.0
    %1165 = vmatprep.subr.mxu0 0.0
    %1166 = vmatpush1.msra.mxu0 0.0
    %1167 = vmatprep.subr.mxu0 0.0
    %1168 = vmatpush1.msra.mxu0 0.0
    %1169 = vmatprep.subr.mxu0 0.0
    %1170 = vmatpush1.msra.mxu0 0.0
    %1171 = vmatprep.subr.mxu0 0.0
    %1172 = vmatpush1.msra.mxu0 0.0
    %1173 = vmatprep.subr.mxu0 0.0
    %1174 = vmatpush1.msra.mxu0 0.0
    %1175 = vmatprep.subr.mxu0 0.0
    %1176 = vmatpush1.msra.mxu0 0.0
    %1177 = vmatprep.subr.mxu0 0.0
    %1178 = vmatpush1.msra.mxu0 0.0
    %1179 = vmatprep.subr.mxu0 0.0
    %1180 = vmatpush1.msra.mxu0 0.0
    %1181 = vmatprep.subr.mxu0 0.0
    %1182 = vmatpush1.msra.mxu0 0.0
    %1183 = vmatprep.subr.mxu0 0.0
    %1184 = vmatpush1.msra.mxu0 0.0
    %1185 = vmatprep.subr.mxu0 0.0
    %1186 = vmatpush1.msra.mxu0 0.0
    %1187 = vmatprep.subr.mxu0 0.0
    %1188 = vmatpush1.msra.mxu0 0.0
    %1189 = vmatprep.subr.mxu0 0.0
    %1190 = vmatpush1.msra.mxu0 0.0
    %1191 = vmatprep.subr.mxu0 0.0
    %1192 = vmatpush1.msra.mxu0 0.0
    %1193 = vmatprep.subr.mxu0 0.0
    %1194 = vmatpush1.msra.mxu0 0.0
    %1195 = vmatprep.subr.mxu0 0.0
    %1196 = vmatpush1.msra.mxu0 0.0
    %1197 = vmatprep.subr.mxu0 0.0
    %1198 = vmatpush1.msra.mxu0 0.0
    %1199 = vmatprep.subr.mxu0 0.0
    %1200 = vmatpush1.msra.mxu0 0.0
    %1201 = vmatprep.subr.mxu0 0.0
    %1202 = vmatpush1.msra.mxu0 0.0
    %1203 = vmatprep.mubr.f32.mxu0 0.0
    %1204 = vmatmul.mubr.f32.gmra.mrb[0].mxu0 %v1137
    %v1205 = vpop.f32.mrb[0].mxu0
    %v1206 = vadd.f32 0.0, %v1205
    %v1207 = vpop.f32.mrb[0].mxu0
    %1208 = vdwg.mxu0
    %1209 = vrot.lane.b32.xlu0 %v220, 64
    %v1210 = vpop.permute.xlu0 %1209
    %v1213 = vsel %vm279, %v976, 0
    %1215 = vmatprep.subr.mxu0 0.0
    %1216 = vmatpush1.msra.mxu0 %v1210
    %1217 = vmatprep.subr.mxu0 0.0
    %1218 = vmatpush1.msra.mxu0 0.0
    %1219 = vmatprep.subr.mxu0 0.0
    %1220 = vmatpush1.msra.mxu0 0.0
    %1221 = vmatprep.subr.mxu0 0.0
    %1222 = vmatpush1.msra.mxu0 0.0
    %1223 = vmatprep.subr.mxu0 0.0
    %1224 = vmatpush1.msra.mxu0 0.0
    %1225 = vmatprep.subr.mxu0 0.0
    %1226 = vmatpush1.msra.mxu0 0.0
    %1227 = vmatprep.subr.mxu0 0.0
    %1228 = vmatpush1.msra.mxu0 0.0
    %1229 = vmatprep.subr.mxu0 0.0
    %1230 = vmatpush1.msra.mxu0 0.0
    %1231 = vmatprep.subr.mxu0 0.0
    %1232 = vmatpush1.msra.mxu0 0.0
    %1233 = vmatprep.subr.mxu0 0.0
    %1234 = vmatpush1.msra.mxu0 0.0
    %1235 = vmatprep.subr.mxu0 0.0
    %1236 = vmatpush1.msra.mxu0 0.0
    %1237 = vmatprep.subr.mxu0 0.0
    %1238 = vmatpush1.msra.mxu0 0.0
    %1239 = vmatprep.subr.mxu0 0.0
    %1240 = vmatpush1.msra.mxu0 0.0
    %1241 = vmatprep.subr.mxu0 0.0
    %1242 = vmatpush1.msra.mxu0 0.0
    %1243 = vmatprep.subr.mxu0 0.0
    %1244 = vmatpush1.msra.mxu0 0.0
    %1245 = vmatprep.subr.mxu0 0.0
    %1246 = vmatpush1.msra.mxu0 0.0
    %1247 = vmatprep.subr.mxu0 0.0
    %1248 = vmatpush1.msra.mxu0 0.0
    %1249 = vmatprep.subr.mxu0 0.0
    %1250 = vmatpush1.msra.mxu0 0.0
    %1251 = vmatprep.subr.mxu0 0.0
    %1252 = vmatpush1.msra.mxu0 0.0
    %1253 = vmatprep.subr.mxu0 0.0
    %1254 = vmatpush1.msra.mxu0 0.0
    %1255 = vmatprep.subr.mxu0 0.0
    %1256 = vmatpush1.msra.mxu0 0.0
    %1257 = vmatprep.subr.mxu0 0.0
    %1258 = vmatpush1.msra.mxu0 0.0
    %1259 = vmatprep.subr.mxu0 0.0
    %1260 = vmatpush1.msra.mxu0 0.0
    %1261 = vmatprep.subr.mxu0 0.0
    %1262 = vmatpush1.msra.mxu0 0.0
    %1263 = vmatprep.subr.mxu0 0.0
    %1264 = vmatpush1.msra.mxu0 0.0
    %1265 = vmatprep.subr.mxu0 0.0
    %1266 = vmatpush1.msra.mxu0 0.0
    %1267 = vmatprep.subr.mxu0 0.0
    %1268 = vmatpush1.msra.mxu0 0.0
    %1269 = vmatprep.subr.mxu0 0.0
    %1270 = vmatpush1.msra.mxu0 0.0
    %1271 = vmatprep.subr.mxu0 0.0
    %1272 = vmatpush1.msra.mxu0 0.0
    %1273 = vmatprep.subr.mxu0 0.0
    %1274 = vmatpush1.msra.mxu0 0.0
    %1275 = vmatprep.subr.mxu0 0.0
    %1276 = vmatpush1.msra.mxu0 0.0
    %1277 = vmatprep.subr.mxu0 0.0
    %1278 = vmatpush1.msra.mxu0 0.0
    %1279 = vmatprep.mubr.f32.mxu0 0.0
    %1280 = vmatmul.mubr.f32.gmra.mrb[0].mxu0 %v1213
    %v1281 = vpop.f32.mrb[0].mxu0
    %v1282 = vadd.f32 0.0, %v1281
    %v1283 = vpop.f32.mrb[0].mxu0
    %1284 = vdwg.mxu0
    %1285 = vrot.lane.b32.xlu0 %v236, 64
    %v1286 = vpop.permute.xlu0 %1285
    %v1289 = vsel %vm279, %v977, 0
    %1291 = vmatprep.subr.mxu0 0.0
    %1292 = vmatpush1.msra.mxu0 %v1286
    %1293 = vmatprep.subr.mxu0 0.0
    %1294 = vmatpush1.msra.mxu0 0.0
    %1295 = vmatprep.subr.mxu0 0.0
    %1296 = vmatpush1.msra.mxu0 0.0
    %1297 = vmatprep.subr.mxu0 0.0
    %1298 = vmatpush1.msra.mxu0 0.0
    %1299 = vmatprep.subr.mxu0 0.0
    %1300 = vmatpush1.msra.mxu0 0.0
    %1301 = vmatprep.subr.mxu0 0.0
    %1302 = vmatpush1.msra.mxu0 0.0
    %1303 = vmatprep.subr.mxu0 0.0
    %1304 = vmatpush1.msra.mxu0 0.0
    %1305 = vmatprep.subr.mxu0 0.0
    %1306 = vmatpush1.msra.mxu0 0.0
    %1307 = vmatprep.subr.mxu0 0.0
    %1308 = vmatpush1.msra.mxu0 0.0
    %1309 = vmatprep.subr.mxu0 0.0
    %1310 = vmatpush1.msra.mxu0 0.0
    %1311 = vmatprep.subr.mxu0 0.0
    %1312 = vmatpush1.msra.mxu0 0.0
    %1313 = vmatprep.subr.mxu0 0.0
    %1314 = vmatpush1.msra.mxu0 0.0
    %1315 = vmatprep.subr.mxu0 0.0
    %1316 = vmatpush1.msra.mxu0 0.0
    %1317 = vmatprep.subr.mxu0 0.0
    %1318 = vmatpush1.msra.mxu0 0.0
    %1319 = vmatprep.subr.mxu0 0.0
    %1320 = vmatpush1.msra.mxu0 0.0
    %1321 = vmatprep.subr.mxu0 0.0
    %1322 = vmatpush1.msra.mxu0 0.0
    %1323 = vmatprep.subr.mxu0 0.0
    %1324 = vmatpush1.msra.mxu0 0.0
    %1325 = vmatprep.subr.mxu0 0.0
    %1326 = vmatpush1.msra.mxu0 0.0
    %1327 = vmatprep.subr.mxu0 0.0
    %1328 = vmatpush1.msra.mxu0 0.0
    %1329 = vmatprep.subr.mxu0 0.0
    %1330 = vmatpush1.msra.mxu0 0.0
    %1331 = vmatprep.subr.mxu0 0.0
    %1332 = vmatpush1.msra.mxu0 0.0
    %1333 = vmatprep.subr.mxu0 0.0
    %1334 = vmatpush1.msra.mxu0 0.0
    %1335 = vmatprep.subr.mxu0 0.0
    %1336 = vmatpush1.msra.mxu0 0.0
    %1337 = vmatprep.subr.mxu0 0.0
    %1338 = vmatpush1.msra.mxu0 0.0
    %1339 = vmatprep.subr.mxu0 0.0
    %1340 = vmatpush1.msra.mxu0 0.0
    %1341 = vmatprep.subr.mxu0 0.0
    %1342 = vmatpush1.msra.mxu0 0.0
    %1343 = vmatprep.subr.mxu0 0.0
    %1344 = vmatpush1.msra.mxu0 0.0
    %1345 = vmatprep.subr.mxu0 0.0
    %1346 = vmatpush1.msra.mxu0 0.0
    %1347 = vmatprep.subr.mxu0 0.0
    %1348 = vmatpush1.msra.mxu0 0.0
    %1349 = vmatprep.subr.mxu0 0.0
    %1350 = vmatpush1.msra.mxu0 0.0
    %1351 = vmatprep.subr.mxu0 0.0
    %1352 = vmatpush1.msra.mxu0 0.0
    %1353 = vmatprep.subr.mxu0 0.0
    %1354 = vmatpush1.msra.mxu0 0.0
    %1355 = vmatprep.mubr.f32.mxu0 0.0
    %1356 = vmatmul.mubr.f32.gmra.mrb[0].mxu0 %v1289
    %v1357 = vpop.f32.mrb[0].mxu0
    %v1358 = vadd.f32 0.0, %v1357
    %v1359 = vpop.f32.mrb[0].mxu0
    %1360 = vdwg.mxu0
    %1361 = vrot.lane.b32.xlu0 %v249, 64
    %v1362 = vpop.permute.xlu0 %1361
    %v1365 = vsel %vm279, %v978, 0
    %1367 = vmatprep.subr.mxu0 0.0
    %1368 = vmatpush1.msra.mxu0 %v1362
    %1369 = vmatprep.subr.mxu0 0.0
    %1370 = vmatpush1.msra.mxu0 0.0
    %1371 = vmatprep.subr.mxu0 0.0
    %1372 = vmatpush1.msra.mxu0 0.0
    %1373 = vmatprep.subr.mxu0 0.0
    %1374 = vmatpush1.msra.mxu0 0.0
    %1375 = vmatprep.subr.mxu0 0.0
    %1376 = vmatpush1.msra.mxu0 0.0
    %1377 = vmatprep.subr.mxu0 0.0
    %1378 = vmatpush1.msra.mxu0 0.0
    %1379 = vmatprep.subr.mxu0 0.0
    %1380 = vmatpush1.msra.mxu0 0.0
    %1381 = vmatprep.subr.mxu0 0.0
    %1382 = vmatpush1.msra.mxu0 0.0
    %1383 = vmatprep.subr.mxu0 0.0
    %1384 = vmatpush1.msra.mxu0 0.0
    %1385 = vmatprep.subr.mxu0 0.0
    %1386 = vmatpush1.msra.mxu0 0.0
    %1387 = vmatprep.subr.mxu0 0.0
    %1388 = vmatpush1.msra.mxu0 0.0
    %1389 = vmatprep.subr.mxu0 0.0
    %1390 = vmatpush1.msra.mxu0 0.0
    %1391 = vmatprep.subr.mxu0 0.0
    %1392 = vmatpush1.msra.mxu0 0.0
    %1393 = vmatprep.subr.mxu0 0.0
    %1394 = vmatpush1.msra.mxu0 0.0
    %1395 = vmatprep.subr.mxu0 0.0
    %1396 = vmatpush1.msra.mxu0 0.0
    %1397 = vmatprep.subr.mxu0 0.0
    %1398 = vmatpush1.msra.mxu0 0.0
    %1399 = vmatprep.subr.mxu0 0.0
    %1400 = vmatpush1.msra.mxu0 0.0
    %1401 = vmatprep.subr.mxu0 0.0
    %1402 = vmatpush1.msra.mxu0 0.0
    %1403 = vmatprep.subr.mxu0 0.0
    %1404 = vmatpush1.msra.mxu0 0.0
    %1405 = vmatprep.subr.mxu0 0.0
    %1406 = vmatpush1.msra.mxu0 0.0
    %1407 = vmatprep.subr.mxu0 0.0
    %1408 = vmatpush1.msra.mxu0 0.0
    %1409 = vmatprep.subr.mxu0 0.0
    %1410 = vmatpush1.msra.mxu0 0.0
    %1411 = vmatprep.subr.mxu0 0.0
    %1412 = vmatpush1.msra.mxu0 0.0
    %1413 = vmatprep.subr.mxu0 0.0
    %1414 = vmatpush1.msra.mxu0 0.0
    %1415 = vmatprep.subr.mxu0 0.0
    %1416 = vmatpush1.msra.mxu0 0.0
    %1417 = vmatprep.subr.mxu0 0.0
    %1418 = vmatpush1.msra.mxu0 0.0
    %1419 = vmatprep.subr.mxu0 0.0
    %1420 = vmatpush1.msra.mxu0 0.0
    %1421 = vmatprep.subr.mxu0 0.0
    %1422 = vmatpush1.msra.mxu0 0.0
    %1423 = vmatprep.subr.mxu0 0.0
    %1424 = vmatpush1.msra.mxu0 0.0
    %1425 = vmatprep.subr.mxu0 0.0
    %1426 = vmatpush1.msra.mxu0 0.0
    %1427 = vmatprep.subr.mxu0 0.0
    %1428 = vmatpush1.msra.mxu0 0.0
    %1429 = vmatprep.subr.mxu0 0.0
    %1430 = vmatpush1.msra.mxu0 0.0
    %1431 = vmatprep.mubr.f32.mxu0 0.0
    %1432 = vmatmul.mubr.f32.gmra.mrb[0].mxu0 %v1365
    %v1433 = vpop.f32.mrb[0].mxu0
    %v1434 = vadd.f32 0.0, %v1433
    %v1435 = vpop.f32.mrb[0].mxu0
    %1436 = vdwg.mxu0
    %1437 = vrot.lane.b32.xlu0 %v262, 64
    %v1438 = vpop.permute.xlu0 %1437
    %v1441 = vsel %vm279, %v979, 0
    %1443 = vmatprep.subr.mxu0 0.0
    %1444 = vmatpush1.msra.mxu0 %v1438
    %1445 = vmatprep.subr.mxu0 0.0
    %1446 = vmatpush1.msra.mxu0 0.0
    %1447 = vmatprep.subr.mxu0 0.0
    %1448 = vmatpush1.msra.mxu0 0.0
    %1449 = vmatprep.subr.mxu0 0.0
    %1450 = vmatpush1.msra.mxu0 0.0
    %1451 = vmatprep.subr.mxu0 0.0
    %1452 = vmatpush1.msra.mxu0 0.0
    %1453 = vmatprep.subr.mxu0 0.0
    %1454 = vmatpush1.msra.mxu0 0.0
    %1455 = vmatprep.subr.mxu0 0.0
    %1456 = vmatpush1.msra.mxu0 0.0
    %1457 = vmatprep.subr.mxu0 0.0
    %1458 = vmatpush1.msra.mxu0 0.0
    %1459 = vmatprep.subr.mxu0 0.0
    %1460 = vmatpush1.msra.mxu0 0.0
    %1461 = vmatprep.subr.mxu0 0.0
    %1462 = vmatpush1.msra.mxu0 0.0
    %1463 = vmatprep.subr.mxu0 0.0
    %1464 = vmatpush1.msra.mxu0 0.0
    %1465 = vmatprep.subr.mxu0 0.0
    %1466 = vmatpush1.msra.mxu0 0.0
    %1467 = vmatprep.subr.mxu0 0.0
    %1468 = vmatpush1.msra.mxu0 0.0
    %1469 = vmatprep.subr.mxu0 0.0
    %1470 = vmatpush1.msra.mxu0 0.0
    %1471 = vmatprep.subr.mxu0 0.0
    %1472 = vmatpush1.msra.mxu0 0.0
    %1473 = vmatprep.subr.mxu0 0.0
    %1474 = vmatpush1.msra.mxu0 0.0
    %1475 = vmatprep.subr.mxu0 0.0
    %1476 = vmatpush1.msra.mxu0 0.0
    %1477 = vmatprep.subr.mxu0 0.0
    %1478 = vmatpush1.msra.mxu0 0.0
    %1479 = vmatprep.subr.mxu0 0.0
    %1480 = vmatpush1.msra.mxu0 0.0
    %1481 = vmatprep.subr.mxu0 0.0
    %1482 = vmatpush1.msra.mxu0 0.0
    %1483 = vmatprep.subr.mxu0 0.0
    %1484 = vmatpush1.msra.mxu0 0.0
    %1485 = vmatprep.subr.mxu0 0.0
    %1486 = vmatpush1.msra.mxu0 0.0
    %1487 = vmatprep.subr.mxu0 0.0
    %1488 = vmatpush1.msra.mxu0 0.0
    %1489 = vmatprep.subr.mxu0 0.0
    %1490 = vmatpush1.msra.mxu0 0.0
    %1491 = vmatprep.subr.mxu0 0.0
    %1492 = vmatpush1.msra.mxu0 0.0
    %1493 = vmatprep.subr.mxu0 0.0
    %1494 = vmatpush1.msra.mxu0 0.0
    %1495 = vmatprep.subr.mxu0 0.0
    %1496 = vmatpush1.msra.mxu0 0.0
    %1497 = vmatprep.subr.mxu0 0.0
    %1498 = vmatpush1.msra.mxu0 0.0
    %1499 = vmatprep.subr.mxu0 0.0
    %1500 = vmatpush1.msra.mxu0 0.0
    %1501 = vmatprep.subr.mxu0 0.0
    %1502 = vmatpush1.msra.mxu0 0.0
    %1503 = vmatprep.subr.mxu0 0.0
    %1504 = vmatpush1.msra.mxu0 0.0
    %1505 = vmatprep.subr.mxu0 0.0
    %1506 = vmatpush1.msra.mxu0 0.0
    %1507 = vmatprep.mubr.f32.mxu0 0.0
    %1508 = vmatmul.mubr.f32.gmra.mrb[0].mxu0 %v1441
    %v1509 = vpop.f32.mrb[0].mxu0
    %v1510 = vadd.f32 0.0, %v1509
    %v1511 = vpop.f32.mrb[0].mxu0
    %1512 = vdwg.mxu0
    %1513 = vrot.lane.b32.xlu0 %v275, 64
    %v1514 = vpop.permute.xlu0 %1513
    %v1517 = vsel %vm279, %v980, 0
    %1519 = vmatprep.subr.mxu0 0.0
    %1520 = vmatpush1.msra.mxu0 %v1514
    %1521 = vmatprep.subr.mxu0 0.0
    %1522 = vmatpush1.msra.mxu0 0.0
    %1523 = vmatprep.subr.mxu0 0.0
    %1524 = vmatpush1.msra.mxu0 0.0
    %1525 = vmatprep.subr.mxu0 0.0
    %1526 = vmatpush1.msra.mxu0 0.0
    %1527 = vmatprep.subr.mxu0 0.0
    %1528 = vmatpush1.msra.mxu0 0.0
    %1529 = vmatprep.subr.mxu0 0.0
    %1530 = vmatpush1.msra.mxu0 0.0
    %1531 = vmatprep.subr.mxu0 0.0
    %1532 = vmatpush1.msra.mxu0 0.0
    %1533 = vmatprep.subr.mxu0 0.0
    %1534 = vmatpush1.msra.mxu0 0.0
    %1535 = vmatprep.subr.mxu0 0.0
    %1536 = vmatpush1.msra.mxu0 0.0
    %1537 = vmatprep.subr.mxu0 0.0
    %1538 = vmatpush1.msra.mxu0 0.0
    %1539 = vmatprep.subr.mxu0 0.0
    %1540 = vmatpush1.msra.mxu0 0.0
    %1541 = vmatprep.subr.mxu0 0.0
    %1542 = vmatpush1.msra.mxu0 0.0
    %1543 = vmatprep.subr.mxu0 0.0
    %1544 = vmatpush1.msra.mxu0 0.0
    %1545 = vmatprep.subr.mxu0 0.0
    %1546 = vmatpush1.msra.mxu0 0.0
    %1547 = vmatprep.subr.mxu0 0.0
    %1548 = vmatpush1.msra.mxu0 0.0
    %1549 = vmatprep.subr.mxu0 0.0
    %1550 = vmatpush1.msra.mxu0 0.0
    %1551 = vmatprep.subr.mxu0 0.0
    %1552 = vmatpush1.msra.mxu0 0.0
    %1553 = vmatprep.subr.mxu0 0.0
    %1554 = vmatpush1.msra.mxu0 0.0
    %1555 = vmatprep.subr.mxu0 0.0
    %1556 = vmatpush1.msra.mxu0 0.0
    %1557 = vmatprep.subr.mxu0 0.0
    %1558 = vmatpush1.msra.mxu0 0.0
    %1559 = vmatprep.subr.mxu0 0.0
    %1560 = vmatpush1.msra.mxu0 0.0
    %1561 = vmatprep.subr.mxu0 0.0
    %1562 = vmatpush1.msra.mxu0 0.0
    %1563 = vmatprep.subr.mxu0 0.0
    %1564 = vmatpush1.msra.mxu0 0.0
    %1565 = vmatprep.subr.mxu0 0.0
    %1566 = vmatpush1.msra.mxu0 0.0
    %1567 = vmatprep.subr.mxu0 0.0
    %1568 = vmatpush1.msra.mxu0 0.0
    %1569 = vmatprep.subr.mxu0 0.0
    %1570 = vmatpush1.msra.mxu0 0.0
    %1571 = vmatprep.subr.mxu0 0.0
    %1572 = vmatpush1.msra.mxu0 0.0
    %1573 = vmatprep.subr.mxu0 0.0
    %1574 = vmatpush1.msra.mxu0 0.0
    %1575 = vmatprep.subr.mxu0 0.0
    %1576 = vmatpush1.msra.mxu0 0.0
    %1577 = vmatprep.subr.mxu0 0.0
    %1578 = vmatpush1.msra.mxu0 0.0
    %1579 = vmatprep.subr.mxu0 0.0
    %1580 = vmatpush1.msra.mxu0 0.0
    %1581 = vmatprep.subr.mxu0 0.0
    %1582 = vmatpush1.msra.mxu0 0.0
    %1583 = vmatprep.mubr.f32.mxu0 0.0
    %1584 = vmatmul.mubr.f32.gmra.mrb[0].mxu0 %v1517
    %v1585 = vpop.f32.mrb[0].mxu0
    %v1586 = vadd.f32 0.0, %v1585
    %v1587 = vpop.f32.mrb[0].mxu0
    %1588 = vdwg.mxu0
    %v1590 = vrot.slane %v1054, 2
    %1591 = vrot.lane.b32.xlu0 %v1590, 8
    %v1592 = vpop.permute.xlu0 %1591
    %v1594 = vrot.slane %v1054, 4
    %1595 = vrot.lane.b32.xlu0 %v1594, 16
    %v1596 = vpop.permute.xlu0 %1595
    %v1598 = vrot.slane %v1054, 6
    %1599 = vrot.lane.b32.xlu0 %v1598, 24
    %v1600 = vpop.permute.xlu0 %1599
    %v1602 = vsel %vm279, %v1054, %v1592
    %vm1603 = vcmask 130048
    %v1604 = vsel %vm1603, %v1602, %v1596
    %vm1605 = vcmask 195584
    %v1606 = vsel %vm1605, %v1604, %v1600
    %v1608 = vrot.slane %v1130, 2
    %1609 = vrot.lane.b32.xlu0 %v1608, 8
    %v1610 = vpop.permute.xlu0 %1609
    %v1612 = vrot.slane %v1130, 4
    %1613 = vrot.lane.b32.xlu0 %v1612, 16
    %v1614 = vpop.permute.xlu0 %1613
    %v1616 = vrot.slane %v1130, 6
    %1617 = vrot.lane.b32.xlu0 %v1616, 24
    %v1618 = vpop.permute.xlu0 %1617
    %v1620 = vsel %vm279, %v1130, %v1610
    %v1621 = vsel %vm1603, %v1620, %v1614
    %v1622 = vsel %vm1605, %v1621, %v1618
    %v1624 = vrot.slane %v1206, 2
    %1625 = vrot.lane.b32.xlu0 %v1624, 8
    %v1626 = vpop.permute.xlu0 %1625
    %v1628 = vrot.slane %v1206, 4
    %1629 = vrot.lane.b32.xlu0 %v1628, 16
    %v1630 = vpop.permute.xlu0 %1629
    %v1632 = vrot.slane %v1206, 6
    %1633 = vrot.lane.b32.xlu0 %v1632, 24
    %v1634 = vpop.permute.xlu0 %1633
    %v1636 = vsel %vm279, %v1206, %v1626
    %v1637 = vsel %vm1603, %v1636, %v1630
    %v1638 = vsel %vm1605, %v1637, %v1634
    %v1640 = vrot.slane %v1282, 2
    %1641 = vrot.lane.b32.xlu0 %v1640, 8
    %v1642 = vpop.permute.xlu0 %1641
    %v1644 = vrot.slane %v1282, 4
    %1645 = vrot.lane.b32.xlu0 %v1644, 16
    %v1646 = vpop.permute.xlu0 %1645
    %v1648 = vrot.slane %v1282, 6
    %1649 = vrot.lane.b32.xlu0 %v1648, 24
    %v1650 = vpop.permute.xlu0 %1649
    %v1652 = vsel %vm279, %v1282, %v1642
    %v1653 = vsel %vm1603, %v1652, %v1646
    %v1654 = vsel %vm1605, %v1653, %v1650
    %v1656 = vrot.slane %v1358, 2
    %1657 = vrot.lane.b32.xlu0 %v1656, 8
    %v1658 = vpop.permute.xlu0 %1657
    %v1660 = vrot.slane %v1358, 4
    %1661 = vrot.lane.b32.xlu0 %v1660, 16
    %v1662 = vpop.permute.xlu0 %1661
    %v1664 = vrot.slane %v1358, 6
    %1665 = vrot.lane.b32.xlu0 %v1664, 24
    %v1666 = vpop.permute.xlu0 %1665
    %v1668 = vsel %vm279, %v1358, %v1658
    %v1669 = vsel %vm1603, %v1668, %v1662
    %v1670 = vsel %vm1605, %v1669, %v1666
    %v1672 = vrot.slane %v1434, 2
    %1673 = vrot.lane.b32.xlu0 %v1672, 8
    %v1674 = vpop.permute.xlu0 %1673
    %v1676 = vrot.slane %v1434, 4
    %1677 = vrot.lane.b32.xlu0 %v1676, 16
    %v1678 = vpop.permute.xlu0 %1677
    %v1680 = vrot.slane %v1434, 6
    %1681 = vrot.lane.b32.xlu0 %v1680, 24
    %v1682 = vpop.permute.xlu0 %1681
    %v1684 = vsel %vm279, %v1434, %v1674
    %v1685 = vsel %vm1603, %v1684, %v1678
    %v1686 = vsel %vm1605, %v1685, %v1682
    %v1688 = vrot.slane %v1510, 2
    %1689 = vrot.lane.b32.xlu0 %v1688, 8
    %v1690 = vpop.permute.xlu0 %1689
    %v1692 = vrot.slane %v1510, 4
    %1693 = vrot.lane.b32.xlu0 %v1692, 16
    %v1694 = vpop.permute.xlu0 %1693
    %v1696 = vrot.slane %v1510, 6
    %1697 = vrot.lane.b32.xlu0 %v1696, 24
    %v1698 = vpop.permute.xlu0 %1697
    %v1700 = vsel %vm279, %v1510, %v1690
    %v1701 = vsel %vm1603, %v1700, %v1694
    %v1702 = vsel %vm1605, %v1701, %v1698
    %v1704 = vrot.slane %v1586, 2
    %1705 = vrot.lane.b32.xlu0 %v1704, 8
    %v1706 = vpop.permute.xlu0 %1705
    %v1708 = vrot.slane %v1586, 4
    %1709 = vrot.lane.b32.xlu0 %v1708, 16
    %v1710 = vpop.permute.xlu0 %1709
    %v1712 = vrot.slane %v1586, 6
    %1713 = vrot.lane.b32.xlu0 %v1712, 24
    %v1714 = vpop.permute.xlu0 %1713
    %v1716 = vsel %vm279, %v1586, %v1706
    %v1717 = vsel %vm1603, %v1716, %v1710
    %v1718 = vsel %vm1605, %v1717, %v1714
    %v1720 = vrot.slane %v1622, 6
    %v1723 = vrot.slane %v1638, 4
    %v1726 = vrot.slane %v1654, 2
    %v1729 = vrot.slane %v1686, 6
    %v1732 = vrot.slane %v1702, 4
    %v1735 = vrot.slane %v1718, 2
    %v1737 = vsel %vm176, %v1606, %v1720
    %v1738 = vsel %vm178, %v1737, %v1723
    %v1739 = vsel %vm180, %v1738, %v1726
    %v1740 = vsel %vm176, %v1670, %v1729
    %v1741 = vsel %vm178, %v1740, %v1732
    %v1742 = vsel %vm180, %v1741, %v1735
    %v1743 = vld [vmem:[#allocation7] sm:$0xff]
    %v1744 = vld [vmem:[#allocation7 + $0x8] sm:$0xff]
    %v1745 = vld [vmem:[#allocation7 + $0x10] sm:$0xff]
    %v1746 = vld [vmem:[#allocation7 + $0x18] sm:$0xff]
    %v1747 = vld [vmem:[%s4] sm:$0x1]
    %v1749 = vlaneseq
    %v1750 = vshrl.u32 %v1749, 7
    %v1751 = vsub.s32 0, %v1750
    %v1752 = vrot.slane %v1747, %v1751
    %v1755 = vsel %vm81, %v1739, 0
    %v1758 = vsel %vm81, %v1742, 0
    %1760 = vmatprep.subr.mxu0 0.0
    %1761 = vmatpush1.msra.mxu0 %v1743
    %1762 = vmatprep.subr.mxu0 0.0
    %1763 = vmatpush1.msra.mxu0 %v1744
    %1764 = vmatprep.subr.mxu0 0.0
    %1765 = vmatpush1.msra.mxu0 %v1745
    %1766 = vmatprep.subr.mxu0 0.0
    %1767 = vmatpush1.msra.mxu0 %v1746
    %1768 = vmatprep.subr.mxu0 0.0
    %1769 = vmatpush1.msra.mxu0 0.0
    %1770 = vmatprep.subr.mxu0 0.0
    %1771 = vmatpush1.msra.mxu0 0.0
    %1772 = vmatprep.subr.mxu0 0.0
    %1773 = vmatpush1.msra.mxu0 0.0
    %1774 = vmatprep.subr.mxu0 0.0
    %1775 = vmatpush1.msra.mxu0 0.0
    %1776 = vmatprep.subr.mxu0 0.0
    %1777 = vmatpush1.msra.mxu0 0.0
    %1778 = vmatprep.subr.mxu0 0.0
    %1779 = vmatpush1.msra.mxu0 0.0
    %1780 = vmatprep.subr.mxu0 0.0
    %1781 = vmatpush1.msra.mxu0 0.0
    %1782 = vmatprep.subr.mxu0 0.0
    %1783 = vmatpush1.msra.mxu0 0.0
    %1784 = vmatprep.subr.mxu0 0.0
    %1785 = vmatpush1.msra.mxu0 0.0
    %1786 = vmatprep.subr.mxu0 0.0
    %1787 = vmatpush1.msra.mxu0 0.0
    %1788 = vmatprep.subr.mxu0 0.0
    %1789 = vmatpush1.msra.mxu0 0.0
    %1790 = vmatprep.subr.mxu0 0.0
    %1791 = vmatpush1.msra.mxu0 0.0
    %1792 = vmatprep.subr.mxu0 0.0
    %1793 = vmatpush1.msra.mxu0 0.0
    %1794 = vmatprep.subr.mxu0 0.0
    %1795 = vmatpush1.msra.mxu0 0.0
    %1796 = vmatprep.subr.mxu0 0.0
    %1797 = vmatpush1.msra.mxu0 0.0
    %1798 = vmatprep.subr.mxu0 0.0
    %1799 = vmatpush1.msra.mxu0 0.0
    %1800 = vmatprep.subr.mxu0 0.0
    %1801 = vmatpush1.msra.mxu0 0.0
    %1802 = vmatprep.subr.mxu0 0.0
    %1803 = vmatpush1.msra.mxu0 0.0
    %1804 = vmatprep.subr.mxu0 0.0
    %1805 = vmatpush1.msra.mxu0 0.0
    %1806 = vmatprep.subr.mxu0 0.0
    %1807 = vmatpush1.msra.mxu0 0.0
    %1808 = vmatprep.subr.mxu0 0.0
    %1809 = vmatpush1.msra.mxu0 0.0
    %1810 = vmatprep.subr.mxu0 0.0
    %1811 = vmatpush1.msra.mxu0 0.0
    %1812 = vmatprep.subr.mxu0 0.0
    %1813 = vmatpush1.msra.mxu0 0.0
    %1814 = vmatprep.subr.mxu0 0.0
    %1815 = vmatpush1.msra.mxu0 0.0
    %1816 = vmatprep.subr.mxu0 0.0
    %1817 = vmatpush1.msra.mxu0 0.0
    %1818 = vmatprep.subr.mxu0 0.0
    %1819 = vmatpush1.msra.mxu0 0.0
    %1820 = vmatprep.subr.mxu0 0.0
    %1821 = vmatpush1.msra.mxu0 0.0
    %1822 = vmatprep.subr.mxu0 0.0
    %1823 = vmatpush1.msra.mxu0 0.0
    %1824 = vmatprep.mubr.f32.mxu0 0.0
    %1825 = vmatmul.mubr.f32.gmra.mrb[0].mxu0 %v1755
    %v1826 = vpop.f32.mrb[0].mxu0
    %v1827 = vadd.f32 %v1752, %v1826
    %v1828 = vpop.f32.mrb[0].mxu0
    %1829 = vmatprep.mubr.f32.mxu0 0.0
    %1830 = vmatmul.mubr.f32.gmra.mrb[0].mxu0 %v1758
    %v1831 = vpop.f32.mrb[0].mxu0
    %v1832 = vadd.f32 %v1752, %v1831
    %v1833 = vpop.f32.mrb[0].mxu0
    %1834 = vdwg.mxu0
    %v1835 = vadd.f32 %v1827, %v68
    %v1836 = vadd.f32 %v1832, %v69
    %v1837 = vsel %vm81, %v1835, 0.0
    %1838 = vadd.xlane.f32.xlu0 %v1837
    %v1839 = vpop.xlane.xlu0 %1838
    %v1840 = vsel %vm81, %v1836, 0.0
    %1841 = vadd.xlane.f32.xlu0 %v1840
    %v1842 = vpop.xlane.xlu0 %1841
    %v1843 = vrcp.pop 32.0
    %v1844 = vmul.f32 %v1839, %v1843
    %v1845 = vmul.f32 %v1842, %v1843
    %v1846 = vsub.f32 %v1835, %v1844
    %v1847 = vsub.f32 %v1836, %v1845
    %v1848 = vmul.f32 %v1846, %v1846
    %v1849 = vmul.f32 %v1847, %v1847
    %v1850 = vsel %vm81, %v1848, 0.0
    %1851 = vadd.xlane.f32.xlu0 %v1850
    %v1852 = vpop.xlane.xlu0 %1851
    %v1853 = vsel %vm81, %v1849, 0.0
    %1854 = vadd.xlane.f32.xlu0 %v1853
    %v1855 = vpop.xlane.xlu0 %1854
    %v1856 = vmul.f32 %v1852, %v1843
    %v1857 = vmul.f32 %v1855, %v1843
    %v1858 = vadd.f32 %v1856, 1e-05
    %v1859 = vadd.f32 %v1857, 1e-05
    %v1860 = vrsqrt.pop %v1858
    %v1861 = vrsqrt.pop %v1859
    %v1862 = vmul.f32 %v1846, %v1860
    %v1863 = vmul.f32 %v1847, %v1861
    %v1864 = vld [vmem:[%s5] sm:$0x1]
    %v1866 = vlaneseq
    %v1867 = vshrl.u32 %v1866, 7
    %v1868 = vsub.s32 0, %v1867
    %v1869 = vrot.slane %v1864, %v1868
    %v1871 = vmul.f32 %v1862, %v1869
    %v1872 = vmul.f32 %v1863, %v1869
    %v1873 = vld [vmem:[%s6] sm:$0x1]
    %v1875 = vlaneseq
    %v1876 = vshrl.u32 %v1875, 7
    %v1877 = vsub.s32 0, %v1876
    %v1878 = vrot.slane %v1873, %v1877
    %v1880 = vadd.f32 %v1871, %v1878
    %v1881 = vadd.f32 %v1872, %v1878
    %1882 = vst.msk [vmem:[#allocation8] sm:$0xff] %vm81, %v1880
    %1883 = vst.msk [vmem:[#allocation8 + $0x8] sm:$0xff] %vm81, %v1881
    // Predicated region
    $region42: #{tpu_custom_call.1} parent=1 // pred_check
      _
    $region43: #{tpu_custom_call.1} parent=1 // pred_check_branch
      %1885 = sbr.rel (0) target = $region45
    $region44: #{tpu_custom_call.1} parent=1 // pred_region
      %s1887 = ssub.s32 256, 256
      %1888 = vsyncadd [#allocation4], %s1887
      %s1889 = sshll.u32 [#allocation8], 4
      %s1890 = int_to_ptr.vmem [resolvable:$true] %s1889
      %1895 = dma.vmem_to_hbm [thread:$0]  %s1890, 256, %s7, [#allocation4], 128, 128, 8
    $region45: #{tpu_custom_call.1} parent=1 // pred_fallthru
      _
    // Predicated region
    $region46: #{tpu_custom_call.1} parent=1 // pred_check
      _
    $region47: #{tpu_custom_call.1} parent=1 // pred_check_branch
      %1897 = sbr.rel (0) target = $region49
    $region48: #{tpu_custom_call.1} parent=1 // pred_region
      %1898 = dma.done [#allocation4], 256
    $region49: #{tpu_custom_call.1} parent=1 // pred_fallthru
      _
    %1899 = vsyncpa [#allocation3], 1
    %1900 = vsyncpa [#allocation6], 1
    %1901 = vsyncpa [#allocation4], 1

</llo_original>
